<compile_context>
chip_gen: v6e
topology: v6e:2x2x1
jax: 0.10.0
libtpu: 0.0.40
codegen_flags: <defaults>
</compile_context>

<pallas_src>
import math

import numpy as np
import jax
import jax.numpy as jnp
from jax.experimental import pallas as pl
from jax.experimental.pallas import tpu as pltpu


# ----------------------------------------------------------------------------
# Fused forward kernel (one grid step == one batch element)
# ----------------------------------------------------------------------------

def _make_fused_kernel(layer_cfgs, K, L, NC):
    """Builds the fused TCN forward kernel.

    Kernel ref order: x_ref, *param_refs, logits_ref, probs_ref, preds_ref
      x_ref:      (1, C_in, L + Ptot)   raw input, left-padded by total causal pad
      params:     per layer: [w1_tap0..w1_tapK-1, b1, w2_tap0.., b2, (w_ds, b_ds)]
                  then head: wa (C,1), ba (1,1), wl (NC,C), bl (NC,1)
      logits_ref: (1, NC, L)   probs_ref: (1, NC, L)   preds_ref: (1, 1, L) int32
    """

    def kernel(*refs):
        x_ref = refs[0]
        param_refs = refs[1:-3]
        logits_ref, probs_ref, preds_ref = refs[-3:]
        it = iter(param_refs)

        def zero_pad_region(v, n_pad):
            # Re-zero the leading n_pad lanes (they represent causal left-padding).
            if n_pad == 0:
                return v
            lane = jax.lax.broadcasted_iota(jnp.int32, v.shape, 1)
            return jnp.where(lane >= n_pad, v, 0.0)

        h = x_ref[0].astype(jnp.float32)          # (C_in, L + Ptot)
        pad_left = h.shape[-1] - L                # remaining causal left-pad

        for cfg in layer_cfgs:
            dil = cfg["dilation"]
            P = (K - 1) * dil
            inp = h
            inp_pad = pad_left

            for _ in range(2):                    # conv1 / conv2 of TemporalBlock
                w_taps = [next(it)[...] for _ in range(K)]   # each (C_out, C_in_cur)
                b = next(it)[...]                            # (C_out, 1), BN folded
                new_len = h.shape[-1] - P
                acc = jnp.dot(w_taps[0], h[:, :new_len],
                              preferred_element_type=jnp.float32)
                for k in range(1, K):
                    acc = acc + jnp.dot(w_taps[k],
                                        h[:, k * dil:k * dil + new_len],
                                        preferred_element_type=jnp.float32)
                pad_left -= P
                # conv + BN + ReLU (+ dropout: identity); re-zero pad region so it
                # keeps acting as causal zero-padding for the next conv.
                h = zero_pad_region(jnp.maximum(acc + b, 0.0), pad_left)

            # residual branch (identity or 1x1 downsample), aligned to h's length
            res_in = inp[:, inp_pad - pad_left:]
            if cfg["downsample"]:
                w_ds = next(it)[...]                         # (C_out, C_in)
                b_ds = next(it)[...]                         # (C_out, 1)
                res = jnp.dot(w_ds, res_in,
                              preferred_element_type=jnp.float32) + b_ds
            else:
                res = res_in
            h = zero_pad_region(jnp.maximum(h + res, 0.0), pad_left)

        # ---- attention head in NCL layout: z is (C, L), pad_left == 0 here ----
        z = h
        wa = next(it)[...]                                   # (C, 1)
        ba = next(it)[...]                                   # (1, 1)
        wl = next(it)[...]                                   # (NC, C)
        bl = next(it)[...]                                   # (NC, 1)

        # attention: VPU multiply + sublane reduce instead of an N=1 MXU matmul
        attn = jax.nn.sigmoid(jnp.sum(z * wa, axis=0, keepdims=True) + ba)   # (1, L)
        zw = z * attn                                                        # (C, L)
        logits = jnp.dot(wl, zw, preferred_element_type=jnp.float32) + bl    # (NC, L)
        logits_ref[0] = logits.astype(logits_ref.dtype)

        m = jnp.max(logits, axis=0, keepdims=True)
        e = jnp.exp(logits - m)
        probs = e / jnp.sum(e, axis=0, keepdims=True)
        probs_ref[0] = probs.astype(probs_ref.dtype)

        # first-occurrence argmax over the class (sublane) axis, lane-dense output
        cls = jax.lax.broadcasted_iota(jnp.int32, probs.shape, 0).astype(jnp.float32)
        mx = jnp.max(probs, axis=0, keepdims=True)
        preds_f = jnp.min(jnp.where(probs == mx, cls, float(NC)),
                          axis=0, keepdims=True)                            # (1, L)
        preds_ref[0] = preds_f.astype(jnp.int32)

    return kernel


# ----------------------------------------------------------------------------
# Forward wrapper
# ----------------------------------------------------------------------------

def _const_spec(a):
    nd = a.ndim
    return pl.BlockSpec(a.shape, lambda b, nd=nd: (0,) * nd)


def tcn_forward(x, params):
    """x: (B, seq_len, input_size). Returns (logits (B,L,NC), probs (B,L,NC), preds (B,L))."""
    B, L, C_in = x.shape
    K = params["kernel_size"]
    NC = params["num_classes"]
    layer_cfgs = params["layer_cfgs"]
    flat_params = params["flat"]

    # total causal left-pad of the whole stack (2 convs per layer)
    Ptot = sum(2 * (K - 1) * cfg["dilation"] for cfg in layer_cfgs)

    # Only host-side prep: tiny transpose + single left-pad of the RAW input.
    x_ncl = jnp.transpose(x, (0, 2, 1))                       # (B, C_in, L)
    x_pad = jnp.pad(x_ncl, ((0, 0), (0, 0), (Ptot, 0)))       # (B, C_in, L+Ptot)

    kernel = _make_fused_kernel(layer_cfgs, K, L, NC)

    # advisory cost estimate for XLA scheduling
    flops = 0
    for cfg in layer_cfgs:
        cin, cout = cfg["in_ch"], cfg["out_ch"]
        flops += 2 * cout * cin * K * L + 2 * cout * cout * K * L
        if cfg["downsample"]:
            flops += 2 * cout * cin * L
        flops += 2 * cout * L
    C_last = layer_cfgs[-1]["out_ch"]
    flops += 2 * C_last * L + 2 * NC * C_last * L
    flops *= B
    transcendentals = B * L * (1 + NC)
    bytes_accessed = 4 * (int(x_pad.size)
                          + sum(int(a.size) for a in flat_params)
                          + 2 * B * NC * L + B * L)
    cost = pl.CostEstimate(flops=int(flops),
                           transcendentals=int(transcendentals),
                           bytes_accessed=int(bytes_accessed))

    in_specs = [pl.BlockSpec((1, C_in, L + Ptot), lambda b: (b, 0, 0))]
    in_specs += [_const_spec(a) for a in flat_params]

    logits_ncl, probs_ncl, preds_ncl = pl.pallas_call(
        kernel,
        out_shape=(
            jax.ShapeDtypeStruct((B, NC, L), jnp.float32),
            jax.ShapeDtypeStruct((B, NC, L), jnp.float32),
            jax.ShapeDtypeStruct((B, 1, L), jnp.int32),
        ),
        grid=(B,),
        in_specs=in_specs,
        out_specs=(
            pl.BlockSpec((1, NC, L), lambda b: (b, 0, 0)),
            pl.BlockSpec((1, NC, L), lambda b: (b, 0, 0)),
            pl.BlockSpec((1, 1, L), lambda b: (b, 0, 0)),
        ),
        compiler_params=pltpu.CompilerParams(
            dimension_semantics=("parallel",)),
        cost_estimate=cost,
    )(x_pad, *flat_params)

    # tiny (B, NC, L) -> (B, L, NC) reshuffles for the downstream (host) API
    logits = jnp.transpose(logits_ncl, (0, 2, 1))
    probs = jnp.transpose(probs_ncl, (0, 2, 1))
    preds = preds_ncl[:, 0, :]
    return logits, probs, preds


# ----------------------------------------------------------------------------
# Parameter initialization (deterministic, synthetic; BN folded at build time)
# ----------------------------------------------------------------------------

def _weight_norm_fold(v):
    # nn.utils.weight_norm: w = g * v / ||v|| with g initialized to ||v|| -> w == v
    norm = jnp.sqrt(jnp.sum(v * v, axis=(1, 2), keepdims=True))
    return norm * v / norm


def init_params(key, input_size, num_channels, kernel_size, output_size):
    eps = 1e-5
    bn_scale = 1.0 / math.sqrt(1.0 + eps)   # BN eval: gamma=1, beta=0, mean=0, var=1
    K = kernel_size
    layer_cfgs = []
    flat = []
    keys = jax.random.split(key, 4 * len(num_channels) + 4)
    ki = 0
    for i, out_ch in enumerate(num_channels):
        in_ch = input_size if i == 0 else num_channels[i - 1]
        dilation = 2 ** i
        std1 = math.sqrt(2.0 / (in_ch * K))
        std2 = math.sqrt(2.0 / (out_ch * K))
        v1 = std1 * jax.random.normal(keys[ki], (out_ch, in_ch, K), jnp.float32); ki += 1
        v2 = std2 * jax.random.normal(keys[ki], (out_ch, out_ch, K), jnp.float32); ki += 1
        w1 = _weight_norm_fold(v1)
        w2 = _weight_norm_fold(v2)
        b1 = 0.05 * jax.random.normal(keys[ki], (out_ch,), jnp.float32); ki += 1
        b2 = 0.05 * jax.random.normal(keys[ki], (out_ch,), jnp.float32); ki += 1
        # BN folded into conv weights/biases; weights pre-split per tap
        for k in range(K):
            flat.append(bn_scale * w1[:, :, k])
        flat.append((bn_scale * b1).reshape(out_ch, 1))
        for k in range(K):
            flat.append(bn_scale * w2[:, :, k])
        flat.append((bn_scale * b2).reshape(out_ch, 1))
        downsample = in_ch != out_ch
        if downsample:
            std_ds = math.sqrt(2.0 / in_ch)
            w_ds = std_ds * jax.random.normal(
                jax.random.fold_in(key, 1000 + i), (out_ch, in_ch), jnp.float32)
            b_ds = 0.05 * jax.random.normal(
                jax.random.fold_in(key, 2000 + i), (out_ch, 1), jnp.float32)
            flat.append(w_ds)
            flat.append(b_ds)
        layer_cfgs.append(dict(dilation=dilation, in_ch=in_ch, out_ch=out_ch,
                               downsample=downsample))

    C = num_channels[-1]
    wa = (1.0 / math.sqrt(C)) * jax.random.normal(keys[ki], (C, 1), jnp.float32); ki += 1
    ba = 0.05 * jax.random.normal(keys[ki], (1, 1), jnp.float32); ki += 1
    wl = (1.0 / math.sqrt(C)) * jax.random.normal(keys[ki], (output_size, C), jnp.float32); ki += 1
    bl = 0.05 * jax.random.normal(keys[ki], (output_size, 1), jnp.float32); ki += 1
    flat += [wa, ba, wl, bl]
    # TODO(synk): SEBlock path (use_se=True) not implemented; TCN default is use_se=False.
    return dict(flat=flat, layer_cfgs=layer_cfgs, kernel_size=K,
                num_classes=output_size)


# ----------------------------------------------------------------------------
# Host-side sequential post-processing (faithful NumPy port of the torch loops)
# ----------------------------------------------------------------------------

def postprocess(probs, predictions,
                conservative_no_activity=True, apply_transition_rules=True):
    probs = np.asarray(probs)
    predictions = np.asarray(predictions).astype(np.int64)
    batch_size, seq_len, num_classes = probs.shape
    processed_preds = predictions.copy()

    temporal_window = 5
    static_to_no_activity_threshold = 0.95
    no_activity_to_static_threshold = 0.7
    consecutive_frames_threshold = 3
    state_durations_cfg = {3: 20}

    transition_matrix = np.ones((5, 5), dtype=np.float32)
    transition_matrix[1, 2] = 0
    transition_matrix[2, 0] = 0
    transition_matrix[0, 3] = 0.3
    transition_matrix[1, 3] = 0.3
    transition_matrix[3, 0] = 0.7
    transition_matrix[3, 1] = 0.7

    state_durations = {3: 0}
    # TODO(synk): the reference relies on Python scoping for `prev_state` across
    # the two loop blocks; initialized to None here to avoid an UnboundLocalError.
    prev_state = None

    if conservative_no_activity:
        for b in range(batch_size):
            consecutive_frames_no_activity = 0
            prev_pred = None
            for t in range(seq_len):
                current_pred = int(predictions[b, t])
                if prev_pred == 3 and current_pred == 3:
                    consecutive_frames_no_activity += 1
                elif current_pred == 3:
                    consecutive_frames_no_activity = 1
                else:
                    consecutive_frames_no_activity = 0
                prev_pred = current_pred
                if current_pred == 3 and t > 0 and int(processed_preds[b, t - 1]) in [0, 1]:
                    if probs[b, t, 3] < static_to_no_activity_threshold:
                        prev_state = int(processed_preds[b, t - 1])
                        if probs[b, t, prev_state] > 0.2:
                            processed_preds[b, t] = processed_preds[b, t - 1]
                        else:
                            temp_probs = probs[b, t].copy()
                            temp_probs[3] = 0
                            processed_preds[b, t] = int(np.argmax(temp_probs))
                elif current_pred in [0, 1] and t > 0 and int(processed_preds[b, t - 1]) == 3:
                    if probs[b, t, current_pred] >= no_activity_to_static_threshold:
                        processed_preds[b, t] = current_pred
                if current_pred == 3:
                    start = max(0, t - temporal_window // 2)
                    end = min(seq_len, t + temporal_window // 2 + 1)
                    window = predictions[b, start:end]
                    static_count = int(((window == 0) | (window == 1)).sum())
                    if static_count > (end - start) * 0.4:
                        standing_count = int((window == 0).sum())
                        sitting_count = int((window == 1).sum())
                        new_pred = 0 if standing_count >= sitting_count else 1
                        processed_preds[b, t] = new_pred
                    elif consecutive_frames_no_activity < consecutive_frames_threshold and t > 0:
                        processed_preds[b, t] = processed_preds[b, t - 1]

    if apply_transition_rules and seq_len > 1:
        for b in range(batch_size):
            for t in range(seq_len):
                curr_state = int(processed_preds[b, t])
                if t > 0:
                    prev_state = int(processed_preds[b, t - 1])
                    if curr_state != prev_state:
                        if prev_state == 3:
                            if state_durations[3] < state_durations_cfg[3]:
                                processed_preds[b, t] = prev_state
                                curr_state = prev_state
                        else:
                            transition_prob = float(transition_matrix[prev_state, curr_state])
                            if 0 < transition_prob < 1:
                                if probs[b, t, curr_state] < transition_prob:
                                    processed_preds[b, t] = prev_state
                                    curr_state = prev_state
                            elif transition_prob == 0:
                                valid_probs = probs[b, t].copy()
                                for next_state in range(num_classes):
                                    if transition_matrix[prev_state, next_state] == 0:
                                        valid_probs[next_state] = 0
                                if valid_probs.sum() > 0:
                                    new_pred = int(np.argmax(valid_probs))
                                    processed_preds[b, t] = new_pred
                                    curr_state = new_pred
                                else:
                                    processed_preds[b, t] = prev_state
                                    curr_state = prev_state
                if curr_state == 3:
                    state_durations[3] += 1
                elif prev_state == 3 and curr_state != 3:
                    state_durations[3] = 0

    return processed_preds.astype(np.int64)


# ----------------------------------------------------------------------------
# Main
# ----------------------------------------------------------------------------

if __name__ == "__main__":
    key = jax.random.PRNGKey(0)

    # Small config consistent with TCN(input_size, output_size, num_channels, ...)
    B, SEQ, INPUT_SIZE = 2, 16, 4
    NUM_CHANNELS = [16, 32]
    KERNEL_SIZE = 2
    OUTPUT_SIZE = 5          # transition matrix is 5x5, states 0..4
    DROPOUT = 0.2            # eval mode -> identity

    params = init_params(key, INPUT_SIZE, NUM_CHANNELS, KERNEL_SIZE, OUTPUT_SIZE)

    x = jax.random.normal(jax.random.fold_in(key, 123), (B, SEQ, INPUT_SIZE),
                          jnp.float32)

    logits, probs, preds = tcn_forward(x, params)
    jax.block_until_ready((logits, probs, preds))

    processed_preds = postprocess(np.array(probs), np.array(preds),
                                  conservative_no_activity=True,
                                  apply_transition_rules=True)

    assert logits.shape == (B, SEQ, OUTPUT_SIZE)
    assert probs.shape == (B, SEQ, OUTPUT_SIZE)
    assert preds.shape == (B, SEQ)
    assert processed_preds.shape == (B, SEQ)
    assert np.isfinite(np.array(logits)).all()

    print("KERNEL_OK")
</pallas_src>

<mosaic_0001>
module attributes {stable_mosaic.version = 11 : i64} {
  func.func @kernel(%arg0: i32, %arg1: memref<1x4x22xf32, #tpu.memory_space<vmem>>, %arg2: memref<16x4xf32, #tpu.memory_space<vmem>>, %arg3: memref<16x4xf32, #tpu.memory_space<vmem>>, %arg4: memref<16x1xf32, #tpu.memory_space<vmem>>, %arg5: memref<16x16xf32, #tpu.memory_space<vmem>>, %arg6: memref<16x16xf32, #tpu.memory_space<vmem>>, %arg7: memref<16x1xf32, #tpu.memory_space<vmem>>, %arg8: memref<16x4xf32, #tpu.memory_space<vmem>>, %arg9: memref<16x1xf32, #tpu.memory_space<vmem>>, %arg10: memref<32x16xf32, #tpu.memory_space<vmem>>, %arg11: memref<32x16xf32, #tpu.memory_space<vmem>>, %arg12: memref<32x1xf32, #tpu.memory_space<vmem>>, %arg13: memref<32x32xf32, #tpu.memory_space<vmem>>, %arg14: memref<32x32xf32, #tpu.memory_space<vmem>>, %arg15: memref<32x1xf32, #tpu.memory_space<vmem>>, %arg16: memref<32x16xf32, #tpu.memory_space<vmem>>, %arg17: memref<32x1xf32, #tpu.memory_space<vmem>>, %arg18: memref<32x1xf32, #tpu.memory_space<vmem>>, %arg19: memref<1x1xf32, #tpu.memory_space<vmem>>, %arg20: memref<5x32xf32, #tpu.memory_space<vmem>>, %arg21: memref<5x1xf32, #tpu.memory_space<vmem>>, %arg22: memref<1x5x16xf32, #tpu.memory_space<vmem>>, %arg23: memref<1x5x16xf32, #tpu.memory_space<vmem>>, %arg24: memref<1x1x16xi32, #tpu.memory_space<vmem>>) attributes {dimension_semantics = [#tpu.dimension_semantics<parallel>], iteration_bounds = array<i64: 2>, scalar_prefetch = 0 : i64, scratch_operands = 0 : i64, tpu.core_type = #tpu.core_type<tc>, window_params = [{transform_indices = @transform_0, window_bounds = array<i64: 1, 4, 22>}, {pipeline_mode = #tpu.pipeline_mode<synchronous>, transform_indices = @transform_1, window_bounds = array<i64: 16, 4>}, {pipeline_mode = #tpu.pipeline_mode<synchronous>, transform_indices = @transform_2, window_bounds = array<i64: 16, 4>}, {pipeline_mode = #tpu.pipeline_mode<synchronous>, transform_indices = @transform_3, window_bounds = array<i64: 16, 1>}, {pipeline_mode = #tpu.pipeline_mode<synchronous>, transform_indices = @transform_4, window_bounds = array<i64: 16, 16>}, {pipeline_mode = #tpu.pipeline_mode<synchronous>, transform_indices = @transform_5, window_bounds = array<i64: 16, 16>}, {pipeline_mode = #tpu.pipeline_mode<synchronous>, transform_indices = @transform_6, window_bounds = array<i64: 16, 1>}, {pipeline_mode = #tpu.pipeline_mode<synchronous>, transform_indices = @transform_7, window_bounds = array<i64: 16, 4>}, {pipeline_mode = #tpu.pipeline_mode<synchronous>, transform_indices = @transform_8, window_bounds = array<i64: 16, 1>}, {pipeline_mode = #tpu.pipeline_mode<synchronous>, transform_indices = @transform_9, window_bounds = array<i64: 32, 16>}, {pipeline_mode = #tpu.pipeline_mode<synchronous>, transform_indices = @transform_10, window_bounds = array<i64: 32, 16>}, {pipeline_mode = #tpu.pipeline_mode<synchronous>, transform_indices = @transform_11, window_bounds = array<i64: 32, 1>}, {pipeline_mode = #tpu.pipeline_mode<synchronous>, transform_indices = @transform_12, window_bounds = array<i64: 32, 32>}, {pipeline_mode = #tpu.pipeline_mode<synchronous>, transform_indices = @transform_13, window_bounds = array<i64: 32, 32>}, {pipeline_mode = #tpu.pipeline_mode<synchronous>, transform_indices = @transform_14, window_bounds = array<i64: 32, 1>}, {pipeline_mode = #tpu.pipeline_mode<synchronous>, transform_indices = @transform_15, window_bounds = array<i64: 32, 16>}, {pipeline_mode = #tpu.pipeline_mode<synchronous>, transform_indices = @transform_16, window_bounds = array<i64: 32, 1>}, {pipeline_mode = #tpu.pipeline_mode<synchronous>, transform_indices = @transform_17, window_bounds = array<i64: 32, 1>}, {pipeline_mode = #tpu.pipeline_mode<synchronous>, transform_indices = @transform_18, window_bounds = array<i64: 1, 1>}, {pipeline_mode = #tpu.pipeline_mode<synchronous>, transform_indices = @transform_19, window_bounds = array<i64: 5, 32>}, {pipeline_mode = #tpu.pipeline_mode<synchronous>, transform_indices = @transform_20, window_bounds = array<i64: 5, 1>}, {transform_indices = @transform_21, window_bounds = array<i64: 1, 5, 16>}, {transform_indices = @transform_22, window_bounds = array<i64: 1, 5, 16>}, {transform_indices = @transform_23, window_bounds = array<i64: 1, 1, 16>}]} {
    %c0 = arith.constant 0 : index
    %c0_0 = arith.constant 0 : index
    %c0_1 = arith.constant 0 : index
    %0 = vector.load %arg1[%c0, %c0_0, %c0_1] : memref<1x4x22xf32, #tpu.memory_space<vmem>>, vector<1x4x22xf32>
    %1 = vector.shape_cast %0 : vector<1x4x22xf32> to vector<4x22xf32>
    %c0_2 = arith.constant 0 : index
    %c0_3 = arith.constant 0 : index
    %2 = vector.load %arg2[%c0_2, %c0_3] : memref<16x4xf32, #tpu.memory_space<vmem>>, vector<16x4xf32>
    %c0_4 = arith.constant 0 : index
    %c0_5 = arith.constant 0 : index
    %3 = vector.load %arg3[%c0_4, %c0_5] : memref<16x4xf32, #tpu.memory_space<vmem>>, vector<16x4xf32>
    %c0_6 = arith.constant 0 : index
    %c0_7 = arith.constant 0 : index
    %4 = vector.load %arg4[%c0_6, %c0_7] : memref<16x1xf32, #tpu.memory_space<vmem>>, vector<16x1xf32>
    %5 = vector.extract_strided_slice %1 {offsets = [0, 0], sizes = [4, 21], strides = [1, 1]} : vector<4x22xf32> to vector<4x21xf32>
    %cst = arith.constant dense<0.000000e+00> : vector<16x21xf32>
    %6 = tpu.matmul %2, %5, %cst {dimension_numbers = #tpu.dot_dimension_numbers<[1], [0], [0], [1], [0, 0, 1, 1], [], []>} : vector<16x4xf32>, vector<4x21xf32>, vector<16x21xf32> -> vector<16x21xf32>
    %7 = vector.extract_strided_slice %1 {offsets = [0, 1], sizes = [4, 21], strides = [1, 1]} : vector<4x22xf32> to vector<4x21xf32>
    %cst_8 = arith.constant dense<0.000000e+00> : vector<16x21xf32>
    %8 = tpu.matmul %3, %7, %cst_8 {dimension_numbers = #tpu.dot_dimension_numbers<[1], [0], [0], [1], [0, 0, 1, 1], [], []>} : vector<16x4xf32>, vector<4x21xf32>, vector<16x21xf32> -> vector<16x21xf32>
    %9 = arith.addf %6, %8 : vector<16x21xf32>
    %10 = vector.broadcast %4 : vector<16x1xf32> to vector<16x21xf32>
    %11 = arith.addf %9, %10 : vector<16x21xf32>
    %cst_9 = arith.constant 0.000000e+00 : f32
    %12 = vector.broadcast %cst_9 : f32 to vector<16x21xf32>
    %13 = arith.maximumf %11, %12 : vector<16x21xf32>
    %14 = tpu.iota {dimensions = array<i32: 1>} : vector<16x21xi32>
    %c5_i32 = arith.constant 5 : i32
    %15 = vector.broadcast %c5_i32 : i32 to vector<16x21xi32>
    %16 = arith.cmpi sge, %14, %15 : vector<16x21xi32>
    %cst_10 = arith.constant 0.000000e+00 : f32
    %17 = vector.broadcast %cst_10 : f32 to vector<16x21xf32>
    %18 = arith.select %16, %13, %17 : vector<16x21xi1>, vector<16x21xf32>
    %c0_11 = arith.constant 0 : index
    %c0_12 = arith.constant 0 : index
    %19 = vector.load %arg5[%c0_11, %c0_12] : memref<16x16xf32, #tpu.memory_space<vmem>>, vector<16x16xf32>
    %c0_13 = arith.constant 0 : index
    %c0_14 = arith.constant 0 : index
    %20 = vector.load %arg6[%c0_13, %c0_14] : memref<16x16xf32, #tpu.memory_space<vmem>>, vector<16x16xf32>
    %c0_15 = arith.constant 0 : index
    %c0_16 = arith.constant 0 : index
    %21 = vector.load %arg7[%c0_15, %c0_16] : memref<16x1xf32, #tpu.memory_space<vmem>>, vector<16x1xf32>
    %22 = vector.extract_strided_slice %18 {offsets = [0, 0], sizes = [16, 20], strides = [1, 1]} : vector<16x21xf32> to vector<16x20xf32>
    %cst_17 = arith.constant dense<0.000000e+00> : vector<16x20xf32>
    %23 = tpu.matmul %19, %22, %cst_17 {dimension_numbers = #tpu.dot_dimension_numbers<[1], [0], [0], [1], [0, 0, 1, 1], [], []>} : vector<16x16xf32>, vector<16x20xf32>, vector<16x20xf32> -> vector<16x20xf32>
    %24 = vector.extract_strided_slice %18 {offsets = [0, 1], sizes = [16, 20], strides = [1, 1]} : vector<16x21xf32> to vector<16x20xf32>
    %cst_18 = arith.constant dense<0.000000e+00> : vector<16x20xf32>
    %25 = tpu.matmul %20, %24, %cst_18 {dimension_numbers = #tpu.dot_dimension_numbers<[1], [0], [0], [1], [0, 0, 1, 1], [], []>} : vector<16x16xf32>, vector<16x20xf32>, vector<16x20xf32> -> vector<16x20xf32>
    %26 = arith.addf %23, %25 : vector<16x20xf32>
    %27 = vector.broadcast %21 : vector<16x1xf32> to vector<16x20xf32>
    %28 = arith.addf %26, %27 : vector<16x20xf32>
    %cst_19 = arith.constant 0.000000e+00 : f32
    %29 = vector.broadcast %cst_19 : f32 to vector<16x20xf32>
    %30 = arith.maximumf %28, %29 : vector<16x20xf32>
    %31 = tpu.iota {dimensions = array<i32: 1>} : vector<16x20xi32>
    %c4_i32 = arith.constant 4 : i32
    %32 = vector.broadcast %c4_i32 : i32 to vector<16x20xi32>
    %33 = arith.cmpi sge, %31, %32 : vector<16x20xi32>
    %cst_20 = arith.constant 0.000000e+00 : f32
    %34 = vector.broadcast %cst_20 : f32 to vector<16x20xf32>
    %35 = arith.select %33, %30, %34 : vector<16x20xi1>, vector<16x20xf32>
    %36 = vector.extract_strided_slice %1 {offsets = [0, 2], sizes = [4, 20], strides = [1, 1]} : vector<4x22xf32> to vector<4x20xf32>
    %c0_21 = arith.constant 0 : index
    %c0_22 = arith.constant 0 : index
    %37 = vector.load %arg8[%c0_21, %c0_22] : memref<16x4xf32, #tpu.memory_space<vmem>>, vector<16x4xf32>
    %c0_23 = arith.constant 0 : index
    %c0_24 = arith.constant 0 : index
    %38 = vector.load %arg9[%c0_23, %c0_24] : memref<16x1xf32, #tpu.memory_space<vmem>>, vector<16x1xf32>
    %cst_25 = arith.constant dense<0.000000e+00> : vector<16x20xf32>
    %39 = tpu.matmul %37, %36, %cst_25 {dimension_numbers = #tpu.dot_dimension_numbers<[1], [0], [0], [1], [0, 0, 1, 1], [], []>} : vector<16x4xf32>, vector<4x20xf32>, vector<16x20xf32> -> vector<16x20xf32>
    %40 = vector.broadcast %38 : vector<16x1xf32> to vector<16x20xf32>
    %41 = arith.addf %39, %40 : vector<16x20xf32>
    %42 = arith.addf %35, %41 : vector<16x20xf32>
    %cst_26 = arith.constant 0.000000e+00 : f32
    %43 = vector.broadcast %cst_26 : f32 to vector<16x20xf32>
    %44 = arith.maximumf %42, %43 : vector<16x20xf32>
    %45 = tpu.iota {dimensions = array<i32: 1>} : vector<16x20xi32>
    %c4_i32_27 = arith.constant 4 : i32
    %46 = vector.broadcast %c4_i32_27 : i32 to vector<16x20xi32>
    %47 = arith.cmpi sge, %45, %46 : vector<16x20xi32>
    %cst_28 = arith.constant 0.000000e+00 : f32
    %48 = vector.broadcast %cst_28 : f32 to vector<16x20xf32>
    %49 = arith.select %47, %44, %48 : vector<16x20xi1>, vector<16x20xf32>
    %c0_29 = arith.constant 0 : index
    %c0_30 = arith.constant 0 : index
    %50 = vector.load %arg10[%c0_29, %c0_30] : memref<32x16xf32, #tpu.memory_space<vmem>>, vector<32x16xf32>
    %c0_31 = arith.constant 0 : index
    %c0_32 = arith.constant 0 : index
    %51 = vector.load %arg11[%c0_31, %c0_32] : memref<32x16xf32, #tpu.memory_space<vmem>>, vector<32x16xf32>
    %c0_33 = arith.constant 0 : index
    %c0_34 = arith.constant 0 : index
    %52 = vector.load %arg12[%c0_33, %c0_34] : memref<32x1xf32, #tpu.memory_space<vmem>>, vector<32x1xf32>
    %53 = vector.extract_strided_slice %49 {offsets = [0, 0], sizes = [16, 18], strides = [1, 1]} : vector<16x20xf32> to vector<16x18xf32>
    %cst_35 = arith.constant dense<0.000000e+00> : vector<32x18xf32>
    %54 = tpu.matmul %50, %53, %cst_35 {dimension_numbers = #tpu.dot_dimension_numbers<[1], [0], [0], [1], [0, 0, 1, 1], [], []>} : vector<32x16xf32>, vector<16x18xf32>, vector<32x18xf32> -> vector<32x18xf32>
    %55 = vector.extract_strided_slice %49 {offsets = [0, 2], sizes = [16, 18], strides = [1, 1]} : vector<16x20xf32> to vector<16x18xf32>
    %cst_36 = arith.constant dense<0.000000e+00> : vector<32x18xf32>
    %56 = tpu.matmul %51, %55, %cst_36 {dimension_numbers = #tpu.dot_dimension_numbers<[1], [0], [0], [1], [0, 0, 1, 1], [], []>} : vector<32x16xf32>, vector<16x18xf32>, vector<32x18xf32> -> vector<32x18xf32>
    %57 = arith.addf %54, %56 : vector<32x18xf32>
    %58 = vector.broadcast %52 : vector<32x1xf32> to vector<32x18xf32>
    %59 = arith.addf %57, %58 : vector<32x18xf32>
    %cst_37 = arith.constant 0.000000e+00 : f32
    %60 = vector.broadcast %cst_37 : f32 to vector<32x18xf32>
    %61 = arith.maximumf %59, %60 : vector<32x18xf32>
    %62 = tpu.iota {dimensions = array<i32: 1>} : vector<32x18xi32>
    %c2_i32 = arith.constant 2 : i32
    %63 = vector.broadcast %c2_i32 : i32 to vector<32x18xi32>
    %64 = arith.cmpi sge, %62, %63 : vector<32x18xi32>
    %cst_38 = arith.constant 0.000000e+00 : f32
    %65 = vector.broadcast %cst_38 : f32 to vector<32x18xf32>
    %66 = arith.select %64, %61, %65 : vector<32x18xi1>, vector<32x18xf32>
    %c0_39 = arith.constant 0 : index
    %c0_40 = arith.constant 0 : index
    %67 = vector.load %arg13[%c0_39, %c0_40] : memref<32x32xf32, #tpu.memory_space<vmem>>, vector<32x32xf32>
    %c0_41 = arith.constant 0 : index
    %c0_42 = arith.constant 0 : index
    %68 = vector.load %arg14[%c0_41, %c0_42] : memref<32x32xf32, #tpu.memory_space<vmem>>, vector<32x32xf32>
    %c0_43 = arith.constant 0 : index
    %c0_44 = arith.constant 0 : index
    %69 = vector.load %arg15[%c0_43, %c0_44] : memref<32x1xf32, #tpu.memory_space<vmem>>, vector<32x1xf32>
    %70 = vector.extract_strided_slice %66 {offsets = [0, 0], sizes = [32, 16], strides = [1, 1]} : vector<32x18xf32> to vector<32x16xf32>
    %cst_45 = arith.constant dense<0.000000e+00> : vector<32x16xf32>
    %71 = tpu.matmul %67, %70, %cst_45 {dimension_numbers = #tpu.dot_dimension_numbers<[1], [0], [0], [1], [0, 0, 1, 1], [], []>} : vector<32x32xf32>, vector<32x16xf32>, vector<32x16xf32> -> vector<32x16xf32>
    %72 = vector.extract_strided_slice %66 {offsets = [0, 2], sizes = [32, 16], strides = [1, 1]} : vector<32x18xf32> to vector<32x16xf32>
    %cst_46 = arith.constant dense<0.000000e+00> : vector<32x16xf32>
    %73 = tpu.matmul %68, %72, %cst_46 {dimension_numbers = #tpu.dot_dimension_numbers<[1], [0], [0], [1], [0, 0, 1, 1], [], []>} : vector<32x32xf32>, vector<32x16xf32>, vector<32x16xf32> -> vector<32x16xf32>
    %74 = arith.addf %71, %73 : vector<32x16xf32>
    %75 = vector.broadcast %69 : vector<32x1xf32> to vector<32x16xf32>
    %76 = arith.addf %74, %75 : vector<32x16xf32>
    %cst_47 = arith.constant 0.000000e+00 : f32
    %77 = vector.broadcast %cst_47 : f32 to vector<32x16xf32>
    %78 = arith.maximumf %76, %77 : vector<32x16xf32>
    %79 = vector.extract_strided_slice %49 {offsets = [0, 4], sizes = [16, 16], strides = [1, 1]} : vector<16x20xf32> to vector<16x16xf32>
    %c0_48 = arith.constant 0 : index
    %c0_49 = arith.constant 0 : index
    %80 = vector.load %arg16[%c0_48, %c0_49] : memref<32x16xf32, #tpu.memory_space<vmem>>, vector<32x16xf32>
    %c0_50 = arith.constant 0 : index
    %c0_51 = arith.constant 0 : index
    %81 = vector.load %arg17[%c0_50, %c0_51] : memref<32x1xf32, #tpu.memory_space<vmem>>, vector<32x1xf32>
    %cst_52 = arith.constant dense<0.000000e+00> : vector<32x16xf32>
    %82 = tpu.matmul %80, %79, %cst_52 {dimension_numbers = #tpu.dot_dimension_numbers<[1], [0], [0], [1], [0, 0, 1, 1], [], []>} : vector<32x16xf32>, vector<16x16xf32>, vector<32x16xf32> -> vector<32x16xf32>
    %83 = vector.broadcast %81 : vector<32x1xf32> to vector<32x16xf32>
    %84 = arith.addf %82, %83 : vector<32x16xf32>
    %85 = arith.addf %78, %84 : vector<32x16xf32>
    %cst_53 = arith.constant 0.000000e+00 : f32
    %86 = vector.broadcast %cst_53 : f32 to vector<32x16xf32>
    %87 = arith.maximumf %85, %86 : vector<32x16xf32>
    %c0_54 = arith.constant 0 : index
    %c0_55 = arith.constant 0 : index
    %88 = vector.load %arg18[%c0_54, %c0_55] : memref<32x1xf32, #tpu.memory_space<vmem>>, vector<32x1xf32>
    %c0_56 = arith.constant 0 : index
    %c0_57 = arith.constant 0 : index
    %89 = vector.load %arg19[%c0_56, %c0_57] : memref<1x1xf32, #tpu.memory_space<vmem>>, vector<1x1xf32>
    %c0_58 = arith.constant 0 : index
    %c0_59 = arith.constant 0 : index
    %90 = vector.load %arg20[%c0_58, %c0_59] : memref<5x32xf32, #tpu.memory_space<vmem>>, vector<5x32xf32>
    %c0_60 = arith.constant 0 : index
    %c0_61 = arith.constant 0 : index
    %91 = vector.load %arg21[%c0_60, %c0_61] : memref<5x1xf32, #tpu.memory_space<vmem>>, vector<5x1xf32>
    %92 = vector.broadcast %88 : vector<32x1xf32> to vector<32x16xf32>
    %93 = arith.mulf %87, %92 : vector<32x16xf32>
    %cst_62 = arith.constant dense<0.000000e+00> : vector<16xf32>
    %94 = vector.multi_reduction <add>, %93, %cst_62 [0] : vector<32x16xf32> to vector<16xf32>
    %95 = vector.shape_cast %94 : vector<16xf32> to vector<1x16xf32>
    %96 = vector.broadcast %89 : vector<1x1xf32> to vector<1x16xf32>
    %97 = arith.addf %95, %96 : vector<1x16xf32>
    %98 = arith.negf %97 : vector<1x16xf32>
    %99 = math.exp %98 : vector<1x16xf32>
    %cst_63 = arith.constant 1.000000e+00 : f32
    %100 = vector.broadcast %cst_63 : f32 to vector<1x16xf32>
    %101 = arith.addf %100, %99 : vector<1x16xf32>
    %102 = arith.divf %100, %101 : vector<1x16xf32>
    %103 = vector.broadcast %102 : vector<1x16xf32> to vector<32x16xf32>
    %104 = arith.mulf %87, %103 : vector<32x16xf32>
    %cst_64 = arith.constant dense<0.000000e+00> : vector<5x16xf32>
    %105 = tpu.matmul %90, %104, %cst_64 {dimension_numbers = #tpu.dot_dimension_numbers<[1], [0], [0], [1], [0, 0, 1, 1], [], []>} : vector<5x32xf32>, vector<32x16xf32>, vector<5x16xf32> -> vector<5x16xf32>
    %106 = vector.broadcast %91 : vector<5x1xf32> to vector<5x16xf32>
    %107 = arith.addf %105, %106 : vector<5x16xf32>
    %c0_65 = arith.constant 0 : index
    %c0_66 = arith.constant 0 : index
    %c0_67 = arith.constant 0 : index
    %108 = vector.load %arg22[%c0_65, %c0_66, %c0_67] : memref<1x5x16xf32, #tpu.memory_space<vmem>>, vector<1x5x16xf32>
    %109 = vector.shape_cast %108 : vector<1x5x16xf32> to vector<5x16xf32>
    %110 = vector.shape_cast %107 : vector<5x16xf32> to vector<1x5x16xf32>
    tpu.vector_store %arg22[%c0_65, %c0_66, %c0_67], %110 {strides = array<i32>} : memref<1x5x16xf32, #tpu.memory_space<vmem>>, vector<1x5x16xf32>,
    %cst_68 = arith.constant dense<0xFF800000> : vector<16xf32>
    %111 = vector.multi_reduction <maximumf>, %107, %cst_68 [0] : vector<5x16xf32> to vector<16xf32>
    %112 = vector.shape_cast %111 : vector<16xf32> to vector<1x16xf32>
    %113 = vector.broadcast %112 : vector<1x16xf32> to vector<5x16xf32>
    %114 = arith.subf %107, %113 : vector<5x16xf32>
    %115 = math.exp %114 : vector<5x16xf32>
    %cst_69 = arith.constant dense<0.000000e+00> : vector<16xf32>
    %116 = vector.multi_reduction <add>, %115, %cst_69 [0] : vector<5x16xf32> to vector<16xf32>
    %117 = vector.shape_cast %116 : vector<16xf32> to vector<1x16xf32>
    %118 = vector.broadcast %117 : vector<1x16xf32> to vector<5x16xf32>
    %119 = arith.divf %115, %118 : vector<5x16xf32>
    %c0_70 = arith.constant 0 : index
    %c0_71 = arith.constant 0 : index
    %c0_72 = arith.constant 0 : index
    %120 = vector.load %arg23[%c0_70, %c0_71, %c0_72] : memref<1x5x16xf32, #tpu.memory_space<vmem>>, vector<1x5x16xf32>
    %121 = vector.shape_cast %120 : vector<1x5x16xf32> to vector<5x16xf32>
    %122 = vector.shape_cast %119 : vector<5x16xf32> to vector<1x5x16xf32>
    tpu.vector_store %arg23[%c0_70, %c0_71, %c0_72], %122 {strides = array<i32>} : memref<1x5x16xf32, #tpu.memory_space<vmem>>, vector<1x5x16xf32>,
    %123 = tpu.iota {dimensions = array<i32: 0>} : vector<5x16xi32>
    %124 = arith.sitofp %123 : vector<5x16xi32> to vector<5x16xf32>
    %cst_73 = arith.constant dense<0xFF800000> : vector<16xf32>
    %125 = vector.multi_reduction <maximumf>, %119, %cst_73 [0] : vector<5x16xf32> to vector<16xf32>
    %126 = vector.shape_cast %125 : vector<16xf32> to vector<1x16xf32>
    %127 = vector.broadcast %126 : vector<1x16xf32> to vector<5x16xf32>
    %128 = arith.cmpf oeq, %119, %127 : vector<5x16xf32>
    %cst_74 = arith.constant 5.000000e+00 : f32
    %129 = vector.broadcast %cst_74 : f32 to vector<5x16xf32>
    %130 = arith.select %128, %124, %129 : vector<5x16xi1>, vector<5x16xf32>
    %cst_75 = arith.constant dense<0x7F800000> : vector<16xf32>
    %131 = vector.multi_reduction <minimumf>, %130, %cst_75 [0] : vector<5x16xf32> to vector<16xf32>
    %132 = vector.shape_cast %131 : vector<16xf32> to vector<1x16xf32>
    %133 = arith.fptosi %132 : vector<1x16xf32> to vector<1x16xi32>
    %c0_76 = arith.constant 0 : index
    %c0_77 = arith.constant 0 : index
    %c0_78 = arith.constant 0 : index
    %134 = vector.load %arg24[%c0_76, %c0_77, %c0_78] : memref<1x1x16xi32, #tpu.memory_space<vmem>>, vector<1x1x16xi32>
    %135 = vector.shape_cast %134 : vector<1x1x16xi32> to vector<1x16xi32>
    %136 = vector.shape_cast %133 : vector<1x16xi32> to vector<1x1x16xi32>
    tpu.vector_store %arg24[%c0_76, %c0_77, %c0_78], %136 {strides = array<i32>} : memref<1x1x16xi32, #tpu.memory_space<vmem>>, vector<1x1x16xi32>,
    return
  }
  func.func @transform_0(%arg0: i32) -> (i32, i32, i32) {
    %c0_i32 = arith.constant 0 : i32
    %c0_i32_0 = arith.constant 0 : i32
    %c0_i32_1 = arith.constant 0 : i32
    return %arg0, %c0_i32, %c0_i32_0 : i32, i32, i32
  }
  func.func @transform_1(%arg0: i32) -> (i32, i32) {
    %c0_i32 = arith.constant 0 : i32
    %c0_i32_0 = arith.constant 0 : i32
    %c0_i32_1 = arith.constant 0 : i32
    return %c0_i32, %c0_i32_0 : i32, i32
  }
  func.func @transform_2(%arg0: i32) -> (i32, i32) {
    %c0_i32 = arith.constant 0 : i32
    %c0_i32_0 = arith.constant 0 : i32
    %c0_i32_1 = arith.constant 0 : i32
    return %c0_i32, %c0_i32_0 : i32, i32
  }
  func.func @transform_3(%arg0: i32) -> (i32, i32) {
    %c0_i32 = arith.constant 0 : i32
    %c0_i32_0 = arith.constant 0 : i32
    %c0_i32_1 = arith.constant 0 : i32
    return %c0_i32, %c0_i32_0 : i32, i32
  }
  func.func @transform_4(%arg0: i32) -> (i32, i32) {
    %c0_i32 = arith.constant 0 : i32
    %c0_i32_0 = arith.constant 0 : i32
    %c0_i32_1 = arith.constant 0 : i32
    return %c0_i32, %c0_i32_0 : i32, i32
  }
  func.func @transform_5(%arg0: i32) -> (i32, i32) {
    %c0_i32 = arith.constant 0 : i32
    %c0_i32_0 = arith.constant 0 : i32
    %c0_i32_1 = arith.constant 0 : i32
    return %c0_i32, %c0_i32_0 : i32, i32
  }
  func.func @transform_6(%arg0: i32) -> (i32, i32) {
    %c0_i32 = arith.constant 0 : i32
    %c0_i32_0 = arith.constant 0 : i32
    %c0_i32_1 = arith.constant 0 : i32
    return %c0_i32, %c0_i32_0 : i32, i32
  }
  func.func @transform_7(%arg0: i32) -> (i32, i32) {
    %c0_i32 = arith.constant 0 : i32
    %c0_i32_0 = arith.constant 0 : i32
    %c0_i32_1 = arith.constant 0 : i32
    return %c0_i32, %c0_i32_0 : i32, i32
  }
  func.func @transform_8(%arg0: i32) -> (i32, i32) {
    %c0_i32 = arith.constant 0 : i32
    %c0_i32_0 = arith.constant 0 : i32
    %c0_i32_1 = arith.constant 0 : i32
    return %c0_i32, %c0_i32_0 : i32, i32
  }
  func.func @transform_9(%arg0: i32) -> (i32, i32) {
    %c0_i32 = arith.constant 0 : i32
    %c0_i32_0 = arith.constant 0 : i32
    %c0_i32_1 = arith.constant 0 : i32
    return %c0_i32, %c0_i32_0 : i32, i32
  }
  func.func @transform_10(%arg0: i32) -> (i32, i32) {
    %c0_i32 = arith.constant 0 : i32
    %c0_i32_0 = arith.constant 0 : i32
    %c0_i32_1 = arith.constant 0 : i32
    return %c0_i32, %c0_i32_0 : i32, i32
  }
  func.func @transform_11(%arg0: i32) -> (i32, i32) {
    %c0_i32 = arith.constant 0 : i32
    %c0_i32_0 = arith.constant 0 : i32
    %c0_i32_1 = arith.constant 0 : i32
    return %c0_i32, %c0_i32_0 : i32, i32
  }
  func.func @transform_12(%arg0: i32) -> (i32, i32) {
    %c0_i32 = arith.constant 0 : i32
    %c0_i32_0 = arith.constant 0 : i32
    %c0_i32_1 = arith.constant 0 : i32
    return %c0_i32, %c0_i32_0 : i32, i32
  }
  func.func @transform_13(%arg0: i32) -> (i32, i32) {
    %c0_i32 = arith.constant 0 : i32
    %c0_i32_0 = arith.constant 0 : i32
    %c0_i32_1 = arith.constant 0 : i32
    return %c0_i32, %c0_i32_0 : i32, i32
  }
  func.func @transform_14(%arg0: i32) -> (i32, i32) {
    %c0_i32 = arith.constant 0 : i32
    %c0_i32_0 = arith.constant 0 : i32
    %c0_i32_1 = arith.constant 0 : i32
    return %c0_i32, %c0_i32_0 : i32, i32
  }
  func.func @transform_15(%arg0: i32) -> (i32, i32) {
    %c0_i32 = arith.constant 0 : i32
    %c0_i32_0 = arith.constant 0 : i32
    %c0_i32_1 = arith.constant 0 : i32
    return %c0_i32, %c0_i32_0 : i32, i32
  }
  func.func @transform_16(%arg0: i32) -> (i32, i32) {
    %c0_i32 = arith.constant 0 : i32
    %c0_i32_0 = arith.constant 0 : i32
    %c0_i32_1 = arith.constant 0 : i32
    return %c0_i32, %c0_i32_0 : i32, i32
  }
  func.func @transform_17(%arg0: i32) -> (i32, i32) {
    %c0_i32 = arith.constant 0 : i32
    %c0_i32_0 = arith.constant 0 : i32
    %c0_i32_1 = arith.constant 0 : i32
    return %c0_i32, %c0_i32_0 : i32, i32
  }
  func.func @transform_18(%arg0: i32) -> (i32, i32) {
    %c0_i32 = arith.constant 0 : i32
    %c0_i32_0 = arith.constant 0 : i32
    %c0_i32_1 = arith.constant 0 : i32
    return %c0_i32, %c0_i32_0 : i32, i32
  }
  func.func @transform_19(%arg0: i32) -> (i32, i32) {
    %c0_i32 = arith.constant 0 : i32
    %c0_i32_0 = arith.constant 0 : i32
    %c0_i32_1 = arith.constant 0 : i32
    return %c0_i32, %c0_i32_0 : i32, i32
  }
  func.func @transform_20(%arg0: i32) -> (i32, i32) {
    %c0_i32 = arith.constant 0 : i32
    %c0_i32_0 = arith.constant 0 : i32
    %c0_i32_1 = arith.constant 0 : i32
    return %c0_i32, %c0_i32_0 : i32, i32
  }
  func.func @transform_21(%arg0: i32) -> (i32, i32, i32) {
    %c0_i32 = arith.constant 0 : i32
    %c0_i32_0 = arith.constant 0 : i32
    %c0_i32_1 = arith.constant 0 : i32
    return %arg0, %c0_i32, %c0_i32_0 : i32, i32, i32
  }
  func.func @transform_22(%arg0: i32) -> (i32, i32, i32) {
    %c0_i32 = arith.constant 0 : i32
    %c0_i32_0 = arith.constant 0 : i32
    %c0_i32_1 = arith.constant 0 : i32
    return %arg0, %c0_i32, %c0_i32_0 : i32, i32, i32
  }
  func.func @transform_23(%arg0: i32) -> (i32, i32, i32) {
    %c0_i32 = arith.constant 0 : i32
    %c0_i32_0 = arith.constant 0 : i32
    %c0_i32_1 = arith.constant 0 : i32
    return %arg0, %c0_i32, %c0_i32_0 : i32, i32, i32
  }
}

</mosaic_0001>

<llo_original>
// kernel: tpu_custom_call.1
$region0: #{tpu_custom_call.1}
  #allocation0 [shape = 'u32[]', space=smem, size = 0x4, offset = 0x4, fixed_abs, tag = 'smem constant byte address 0x4 - core index']
  #allocation1 [shape = 'u32[144,128]{1,0:T(1,128)}', space=vmem, size = 0x12000, scoped, tag = 'internal scratch']
  #allocation2 [shape = 'f32[1,1]{1,0:T(1,128)S(1)}', space=vmem, size = 0x200, scoped, tag = 'scoped memory for tpu_custom_call.1']
  %s0 = inlined_call_operand.vmem [shape: f32[2,4,22], index: 0, kind: input, shape index: {}]
  %s1 = inlined_call_operand.vmem [shape: f32[16,4], index: 1, kind: input, shape index: {}]
  %s2 = inlined_call_operand.vmem [shape: f32[16,4], index: 2, kind: input, shape index: {}]
  %s3 = inlined_call_operand.vmem [shape: f32[16,1], index: 3, kind: input, shape index: {}]
  %s4 = inlined_call_operand.vmem [shape: f32[16,16], index: 4, kind: input, shape index: {}]
  %s5 = inlined_call_operand.vmem [shape: f32[16,16], index: 5, kind: input, shape index: {}]
  %s6 = inlined_call_operand.vmem [shape: f32[16,1], index: 6, kind: input, shape index: {}]
  %s7 = inlined_call_operand.vmem [shape: f32[16,4], index: 7, kind: input, shape index: {}]
  %s8 = inlined_call_operand.vmem [shape: f32[16,1], index: 8, kind: input, shape index: {}]
  %s9 = inlined_call_operand.vmem [shape: f32[32,16], index: 9, kind: input, shape index: {}]
  %s10 = inlined_call_operand.vmem [shape: f32[32,16], index: 10, kind: input, shape index: {}]
  %s11 = inlined_call_operand.vmem [shape: f32[32,1], index: 11, kind: input, shape index: {}]
  %s12 = inlined_call_operand.vmem [shape: f32[32,32], index: 12, kind: input, shape index: {}]
  %s13 = inlined_call_operand.vmem [shape: f32[32,32], index: 13, kind: input, shape index: {}]
  %s14 = inlined_call_operand.vmem [shape: f32[32,1], index: 14, kind: input, shape index: {}]
  %s15 = inlined_call_operand.vmem [shape: f32[32,16], index: 15, kind: input, shape index: {}]
  %s16 = inlined_call_operand.vmem [shape: f32[32,1], index: 16, kind: input, shape index: {}]
  %s17 = inlined_call_operand.vmem [shape: f32[32,1], index: 17, kind: input, shape index: {}]
  %s18 = inlined_call_operand.<no memory space> [shape: f32[1,1], index: 18, kind: input, shape index: {}]
  %s19 = inlined_call_operand.vmem [shape: f32[5,32], index: 19, kind: input, shape index: {}]
  %s20 = inlined_call_operand.vmem [shape: f32[5,1], index: 20, kind: input, shape index: {}]
  %s21 = inlined_call_operand.vmem [shape: f32[2,5,16], index: 21, kind: output, shape index: {0}]
  %s22 = inlined_call_operand.vmem [shape: f32[2,5,16], index: 22, kind: output, shape index: {1}]
  %s23 = inlined_call_operand.hbm [shape: s32[2,1,16], index: 23, kind: output, shape index: {2}]
  %24 = xla_tuple %s21, %s22, %s23
  %s25 = sld [smem:[#allocation0]]
  $region133: #{tpu_custom_call.1} parent=0
    _
  %s27 = ssub.s32 1, %s25
  %s28 = scalar_select 0, %s27, %s25
  %v29 = vstv %s18
  %30 = vst [vmem:[#allocation2] sm:$0x1] %v29
  $region1: #{tpu_custom_call.1} parent=0
    #allocation3 [shape = 'u8[1024]{0}', space=vmem, size = 0x400, scoped, tag = 'output window, operand 2']
    #allocation4 [shape = 's32[2]{0}', space=sflag, size = 0x8, scoped, tag = 'scoped memory for tpu_custom_call.1']
    %31 = vsyncpa [#allocation4], 0
    %s32 = scalar_lea.sflag [#allocation4], 1
    %33 = vsyncpa %s32, 0
    loop: start=0, step=1, limit=4
    $region2: #{tpu_custom_call.1} parent=1 // loop_pre_header
      _
    $region3: #{tpu_custom_call.1} parent=1 // loop_header
      %s35 = sphi 0, %s39
      %p36 = scmp.ge.s32.totalorder %s35, 4
      %s45 = sphi 0, %s47
      %s48 = sphi 0, %s45
      %s49 = sphi 0, %s48
      %s65 = sphi 0, %s49
      %s69 = sphi 0, %s69
      %s71 = sphi 0, %s69
      %s72 = sphi 0, %s71
      %s86 = sphi 0, %s72
      %s90 = sphi 0, %s90
      %s92 = sphi 0, %s90
      %s93 = sphi 0, %s92
      %s107 = sphi 0, %s93
      %s111 = sphi 0, %s111
      %s113 = sphi 0, %s111
      %s114 = sphi 0, %s113
      %s128 = sphi 0, %s114
      %s132 = sphi 0, %s132
      %s134 = sphi 0, %s132
      %s135 = sphi 0, %s134
      %s149 = sphi 0, %s135
      %s153 = sphi 0, %s153
      %s155 = sphi 0, %s153
      %s156 = sphi 0, %s155
      %s170 = sphi 0, %s156
      %s174 = sphi 0, %s174
      %s176 = sphi 0, %s174
      %s177 = sphi 0, %s176
      %s191 = sphi 0, %s177
      %s195 = sphi 0, %s195
      %s197 = sphi 0, %s195
      %s198 = sphi 0, %s197
      %s212 = sphi 0, %s198
      %s216 = sphi 0, %s216
      %s218 = sphi 0, %s216
      %s219 = sphi 0, %s218
      %s233 = sphi 0, %s219
      %s237 = sphi 0, %s237
      %s239 = sphi 0, %s237
      %s240 = sphi 0, %s239
      %s254 = sphi 0, %s240
      %s258 = sphi 0, %s258
      %s260 = sphi 0, %s258
      %s261 = sphi 0, %s260
      %s275 = sphi 0, %s261
      %s279 = sphi 0, %s279
      %s281 = sphi 0, %s279
      %s282 = sphi 0, %s281
      %s296 = sphi 0, %s282
      %s300 = sphi 0, %s300
      %s302 = sphi 0, %s300
      %s303 = sphi 0, %s302
      %s317 = sphi 0, %s303
      %s321 = sphi 0, %s321
      %s323 = sphi 0, %s321
      %s324 = sphi 0, %s323
      %s338 = sphi 0, %s324
      %s342 = sphi 0, %s342
      %s344 = sphi 0, %s342
      %s345 = sphi 0, %s344
      %s359 = sphi 0, %s345
      %s363 = sphi 0, %s363
      %s365 = sphi 0, %s363
      %s366 = sphi 0, %s365
      %s380 = sphi 0, %s366
      %s384 = sphi 0, %s384
      %s386 = sphi 0, %s384
      %s387 = sphi 0, %s386
      %s401 = sphi 0, %s387
      %s405 = sphi 0, %s405
      %s407 = sphi 0, %s405
      %s408 = sphi 0, %s407
      %s422 = sphi 0, %s408
      %s426 = sphi 0, %s426
      %s428 = sphi 0, %s426
      %s429 = sphi 0, %s428
      %s443 = sphi 0, %s429
      %s447 = sphi 0, %s447
      %s449 = sphi 0, %s447
      %s450 = sphi 0, %s449
      %s464 = sphi 0, %s450
      %s468 = sphi 0, %s468
      %s470 = sphi 0, %s468
      %s471 = sphi 0, %s470
      %s485 = sphi 0, %s471
      %s491 = sphi 0, %s493
      %s494 = sphi 0, %s491
      %s495 = sphi 0, %s494
      %s511 = sphi 0, %s495
      %s517 = sphi 0, %s519
      %s520 = sphi 0, %s517
      %s521 = sphi 0, %s520
      %s537 = sphi 0, %s521
      %s543 = sphi 0, %s545
      %s546 = sphi 0, %s543
      %s547 = sphi 0, %s546
      %s563 = sphi 0, %s547
    $region4: #{tpu_custom_call.1} parent=1 // loop_header_branch
      %38 = sbr.rel (%p36) target = $region8
    $region5: #{tpu_custom_call.1} parent=1 // loop_body
      %s40 = ssub.s32 %s35, 1
      %s41 = ssub.s32 %s35, 2
      %s42 = sadd.s32 %s35, 1
      %s43 = ssub.s32 %s35, %s42
      %p44 = scmp.eq.s32.totalorder %s43, 0
      %s46 = sadd.s32 %s45, 1
      %s47 = scalar_select %p44, %s45, %s46
      %p50 = pneg %p44
      %p51 = scmp.eq.s32.totalorder %s35, 1
      %p52 = por %p50, %p51
      %p53 = scmp.ne.s32.totalorder %s45, %s48
      %p54 = scmp.eq.s32.totalorder %s35, 0
      %p55 = por %p53, %p54
      %p56 = scmp.ne.s32.totalorder %s45, %s48
      %p57 = scmp.eq.s32.totalorder %s40, 1
      %p58 = por %p56, %p57
      %p59 = scmp.ne.s32.totalorder %s48, %s49
      %p60 = scmp.eq.s32.totalorder %s40, 0
      %p61 = por %p59, %p60
      %p62 = scmp.ne.s32.totalorder %s48, %s49
      %p63 = scmp.eq.s32.totalorder %s41, 1
      %p64 = por %p62, %p63
      %p66 = scmp.ne.s32.totalorder %s49, %s65
      %p67 = scmp.eq.s32.totalorder %s41, 0
      %p68 = por %p66, %p67
      %s70 = sadd.s32 %s69, 1
      %p73 = scmp.eq.s32.totalorder %s35, 1
      %p74 = scmp.ne.s32.totalorder %s69, %s71
      %p75 = scmp.eq.s32.totalorder %s35, 0
      %p76 = por %p74, %p75
      %p77 = scmp.ne.s32.totalorder %s69, %s71
      %p78 = scmp.eq.s32.totalorder %s40, 1
      %p79 = por %p77, %p78
      %p80 = scmp.ne.s32.totalorder %s71, %s72
      %p81 = scmp.eq.s32.totalorder %s40, 0
      %p82 = por %p80, %p81
      %p83 = scmp.ne.s32.totalorder %s71, %s72
      %p84 = scmp.eq.s32.totalorder %s41, 1
      %p85 = por %p83, %p84
      %p87 = scmp.ne.s32.totalorder %s72, %s86
      %p88 = scmp.eq.s32.totalorder %s41, 0
      %p89 = por %p87, %p88
      %s91 = sadd.s32 %s90, 1
      %p94 = scmp.eq.s32.totalorder %s35, 1
      %p95 = scmp.ne.s32.totalorder %s90, %s92
      %p96 = scmp.eq.s32.totalorder %s35, 0
      %p97 = por %p95, %p96
      %p98 = scmp.ne.s32.totalorder %s90, %s92
      %p99 = scmp.eq.s32.totalorder %s40, 1
      %p100 = por %p98, %p99
      %p101 = scmp.ne.s32.totalorder %s92, %s93
      %p102 = scmp.eq.s32.totalorder %s40, 0
      %p103 = por %p101, %p102
      %p104 = scmp.ne.s32.totalorder %s92, %s93
      %p105 = scmp.eq.s32.totalorder %s41, 1
      %p106 = por %p104, %p105
      %p108 = scmp.ne.s32.totalorder %s93, %s107
      %p109 = scmp.eq.s32.totalorder %s41, 0
      %p110 = por %p108, %p109
      %s112 = sadd.s32 %s111, 1
      %p115 = scmp.eq.s32.totalorder %s35, 1
      %p116 = scmp.ne.s32.totalorder %s111, %s113
      %p117 = scmp.eq.s32.totalorder %s35, 0
      %p118 = por %p116, %p117
      %p119 = scmp.ne.s32.totalorder %s111, %s113
      %p120 = scmp.eq.s32.totalorder %s40, 1
      %p121 = por %p119, %p120
      %p122 = scmp.ne.s32.totalorder %s113, %s114
      %p123 = scmp.eq.s32.totalorder %s40, 0
      %p124 = por %p122, %p123
      %p125 = scmp.ne.s32.totalorder %s113, %s114
      %p126 = scmp.eq.s32.totalorder %s41, 1
      %p127 = por %p125, %p126
      %p129 = scmp.ne.s32.totalorder %s114, %s128
      %p130 = scmp.eq.s32.totalorder %s41, 0
      %p131 = por %p129, %p130
      %s133 = sadd.s32 %s132, 1
      %p136 = scmp.eq.s32.totalorder %s35, 1
      %p137 = scmp.ne.s32.totalorder %s132, %s134
      %p138 = scmp.eq.s32.totalorder %s35, 0
      %p139 = por %p137, %p138
      %p140 = scmp.ne.s32.totalorder %s132, %s134
      %p141 = scmp.eq.s32.totalorder %s40, 1
      %p142 = por %p140, %p141
      %p143 = scmp.ne.s32.totalorder %s134, %s135
      %p144 = scmp.eq.s32.totalorder %s40, 0
      %p145 = por %p143, %p144
      %p146 = scmp.ne.s32.totalorder %s134, %s135
      %p147 = scmp.eq.s32.totalorder %s41, 1
      %p148 = por %p146, %p147
      %p150 = scmp.ne.s32.totalorder %s135, %s149
      %p151 = scmp.eq.s32.totalorder %s41, 0
      %p152 = por %p150, %p151
      %s154 = sadd.s32 %s153, 1
      %p157 = scmp.eq.s32.totalorder %s35, 1
      %p158 = scmp.ne.s32.totalorder %s153, %s155
      %p159 = scmp.eq.s32.totalorder %s35, 0
      %p160 = por %p158, %p159
      %p161 = scmp.ne.s32.totalorder %s153, %s155
      %p162 = scmp.eq.s32.totalorder %s40, 1
      %p163 = por %p161, %p162
      %p164 = scmp.ne.s32.totalorder %s155, %s156
      %p165 = scmp.eq.s32.totalorder %s40, 0
      %p166 = por %p164, %p165
      %p167 = scmp.ne.s32.totalorder %s155, %s156
      %p168 = scmp.eq.s32.totalorder %s41, 1
      %p169 = por %p167, %p168
      %p171 = scmp.ne.s32.totalorder %s156, %s170
      %p172 = scmp.eq.s32.totalorder %s41, 0
      %p173 = por %p171, %p172
      %s175 = sadd.s32 %s174, 1
      %p178 = scmp.eq.s32.totalorder %s35, 1
      %p179 = scmp.ne.s32.totalorder %s174, %s176
      %p180 = scmp.eq.s32.totalorder %s35, 0
      %p181 = por %p179, %p180
      %p182 = scmp.ne.s32.totalorder %s174, %s176
      %p183 = scmp.eq.s32.totalorder %s40, 1
      %p184 = por %p182, %p183
      %p185 = scmp.ne.s32.totalorder %s176, %s177
      %p186 = scmp.eq.s32.totalorder %s40, 0
      %p187 = por %p185, %p186
      %p188 = scmp.ne.s32.totalorder %s176, %s177
      %p189 = scmp.eq.s32.totalorder %s41, 1
      %p190 = por %p188, %p189
      %p192 = scmp.ne.s32.totalorder %s177, %s191
      %p193 = scmp.eq.s32.totalorder %s41, 0
      %p194 = por %p192, %p193
      %s196 = sadd.s32 %s195, 1
      %p199 = scmp.eq.s32.totalorder %s35, 1
      %p200 = scmp.ne.s32.totalorder %s195, %s197
      %p201 = scmp.eq.s32.totalorder %s35, 0
      %p202 = por %p200, %p201
      %p203 = scmp.ne.s32.totalorder %s195, %s197
      %p204 = scmp.eq.s32.totalorder %s40, 1
      %p205 = por %p203, %p204
      %p206 = scmp.ne.s32.totalorder %s197, %s198
      %p207 = scmp.eq.s32.totalorder %s40, 0
      %p208 = por %p206, %p207
      %p209 = scmp.ne.s32.totalorder %s197, %s198
      %p210 = scmp.eq.s32.totalorder %s41, 1
      %p211 = por %p209, %p210
      %p213 = scmp.ne.s32.totalorder %s198, %s212
      %p214 = scmp.eq.s32.totalorder %s41, 0
      %p215 = por %p213, %p214
      %s217 = sadd.s32 %s216, 1
      %p220 = scmp.eq.s32.totalorder %s35, 1
      %p221 = scmp.ne.s32.totalorder %s216, %s218
      %p222 = scmp.eq.s32.totalorder %s35, 0
      %p223 = por %p221, %p222
      %p224 = scmp.ne.s32.totalorder %s216, %s218
      %p225 = scmp.eq.s32.totalorder %s40, 1
      %p226 = por %p224, %p225
      %p227 = scmp.ne.s32.totalorder %s218, %s219
      %p228 = scmp.eq.s32.totalorder %s40, 0
      %p229 = por %p227, %p228
      %p230 = scmp.ne.s32.totalorder %s218, %s219
      %p231 = scmp.eq.s32.totalorder %s41, 1
      %p232 = por %p230, %p231
      %p234 = scmp.ne.s32.totalorder %s219, %s233
      %p235 = scmp.eq.s32.totalorder %s41, 0
      %p236 = por %p234, %p235
      %s238 = sadd.s32 %s237, 1
      %p241 = scmp.eq.s32.totalorder %s35, 1
      %p242 = scmp.ne.s32.totalorder %s237, %s239
      %p243 = scmp.eq.s32.totalorder %s35, 0
      %p244 = por %p242, %p243
      %p245 = scmp.ne.s32.totalorder %s237, %s239
      %p246 = scmp.eq.s32.totalorder %s40, 1
      %p247 = por %p245, %p246
      %p248 = scmp.ne.s32.totalorder %s239, %s240
      %p249 = scmp.eq.s32.totalorder %s40, 0
      %p250 = por %p248, %p249
      %p251 = scmp.ne.s32.totalorder %s239, %s240
      %p252 = scmp.eq.s32.totalorder %s41, 1
      %p253 = por %p251, %p252
      %p255 = scmp.ne.s32.totalorder %s240, %s254
      %p256 = scmp.eq.s32.totalorder %s41, 0
      %p257 = por %p255, %p256
      %s259 = sadd.s32 %s258, 1
      %p262 = scmp.eq.s32.totalorder %s35, 1
      %p263 = scmp.ne.s32.totalorder %s258, %s260
      %p264 = scmp.eq.s32.totalorder %s35, 0
      %p265 = por %p263, %p264
      %p266 = scmp.ne.s32.totalorder %s258, %s260
      %p267 = scmp.eq.s32.totalorder %s40, 1
      %p268 = por %p266, %p267
      %p269 = scmp.ne.s32.totalorder %s260, %s261
      %p270 = scmp.eq.s32.totalorder %s40, 0
      %p271 = por %p269, %p270
      %p272 = scmp.ne.s32.totalorder %s260, %s261
      %p273 = scmp.eq.s32.totalorder %s41, 1
      %p274 = por %p272, %p273
      %p276 = scmp.ne.s32.totalorder %s261, %s275
      %p277 = scmp.eq.s32.totalorder %s41, 0
      %p278 = por %p276, %p277
      %s280 = sadd.s32 %s279, 1
      %p283 = scmp.eq.s32.totalorder %s35, 1
      %p284 = scmp.ne.s32.totalorder %s279, %s281
      %p285 = scmp.eq.s32.totalorder %s35, 0
      %p286 = por %p284, %p285
      %p287 = scmp.ne.s32.totalorder %s279, %s281
      %p288 = scmp.eq.s32.totalorder %s40, 1
      %p289 = por %p287, %p288
      %p290 = scmp.ne.s32.totalorder %s281, %s282
      %p291 = scmp.eq.s32.totalorder %s40, 0
      %p292 = por %p290, %p291
      %p293 = scmp.ne.s32.totalorder %s281, %s282
      %p294 = scmp.eq.s32.totalorder %s41, 1
      %p295 = por %p293, %p294
      %p297 = scmp.ne.s32.totalorder %s282, %s296
      %p298 = scmp.eq.s32.totalorder %s41, 0
      %p299 = por %p297, %p298
      %s301 = sadd.s32 %s300, 1
      %p304 = scmp.eq.s32.totalorder %s35, 1
      %p305 = scmp.ne.s32.totalorder %s300, %s302
      %p306 = scmp.eq.s32.totalorder %s35, 0
      %p307 = por %p305, %p306
      %p308 = scmp.ne.s32.totalorder %s300, %s302
      %p309 = scmp.eq.s32.totalorder %s40, 1
      %p310 = por %p308, %p309
      %p311 = scmp.ne.s32.totalorder %s302, %s303
      %p312 = scmp.eq.s32.totalorder %s40, 0
      %p313 = por %p311, %p312
      %p314 = scmp.ne.s32.totalorder %s302, %s303
      %p315 = scmp.eq.s32.totalorder %s41, 1
      %p316 = por %p314, %p315
      %p318 = scmp.ne.s32.totalorder %s303, %s317
      %p319 = scmp.eq.s32.totalorder %s41, 0
      %p320 = por %p318, %p319
      %s322 = sadd.s32 %s321, 1
      %p325 = scmp.eq.s32.totalorder %s35, 1
      %p326 = scmp.ne.s32.totalorder %s321, %s323
      %p327 = scmp.eq.s32.totalorder %s35, 0
      %p328 = por %p326, %p327
      %p329 = scmp.ne.s32.totalorder %s321, %s323
      %p330 = scmp.eq.s32.totalorder %s40, 1
      %p331 = por %p329, %p330
      %p332 = scmp.ne.s32.totalorder %s323, %s324
      %p333 = scmp.eq.s32.totalorder %s40, 0
      %p334 = por %p332, %p333
      %p335 = scmp.ne.s32.totalorder %s323, %s324
      %p336 = scmp.eq.s32.totalorder %s41, 1
      %p337 = por %p335, %p336
      %p339 = scmp.ne.s32.totalorder %s324, %s338
      %p340 = scmp.eq.s32.totalorder %s41, 0
      %p341 = por %p339, %p340
      %s343 = sadd.s32 %s342, 1
      %p346 = scmp.eq.s32.totalorder %s35, 1
      %p347 = scmp.ne.s32.totalorder %s342, %s344
      %p348 = scmp.eq.s32.totalorder %s35, 0
      %p349 = por %p347, %p348
      %p350 = scmp.ne.s32.totalorder %s342, %s344
      %p351 = scmp.eq.s32.totalorder %s40, 1
      %p352 = por %p350, %p351
      %p353 = scmp.ne.s32.totalorder %s344, %s345
      %p354 = scmp.eq.s32.totalorder %s40, 0
      %p355 = por %p353, %p354
      %p356 = scmp.ne.s32.totalorder %s344, %s345
      %p357 = scmp.eq.s32.totalorder %s41, 1
      %p358 = por %p356, %p357
      %p360 = scmp.ne.s32.totalorder %s345, %s359
      %p361 = scmp.eq.s32.totalorder %s41, 0
      %p362 = por %p360, %p361
      %s364 = sadd.s32 %s363, 1
      %p367 = scmp.eq.s32.totalorder %s35, 1
      %p368 = scmp.ne.s32.totalorder %s363, %s365
      %p369 = scmp.eq.s32.totalorder %s35, 0
      %p370 = por %p368, %p369
      %p371 = scmp.ne.s32.totalorder %s363, %s365
      %p372 = scmp.eq.s32.totalorder %s40, 1
      %p373 = por %p371, %p372
      %p374 = scmp.ne.s32.totalorder %s365, %s366
      %p375 = scmp.eq.s32.totalorder %s40, 0
      %p376 = por %p374, %p375
      %p377 = scmp.ne.s32.totalorder %s365, %s366
      %p378 = scmp.eq.s32.totalorder %s41, 1
      %p379 = por %p377, %p378
      %p381 = scmp.ne.s32.totalorder %s366, %s380
      %p382 = scmp.eq.s32.totalorder %s41, 0
      %p383 = por %p381, %p382
      %s385 = sadd.s32 %s384, 1
      %p388 = scmp.eq.s32.totalorder %s35, 1
      %p389 = scmp.ne.s32.totalorder %s384, %s386
      %p390 = scmp.eq.s32.totalorder %s35, 0
      %p391 = por %p389, %p390
      %p392 = scmp.ne.s32.totalorder %s384, %s386
      %p393 = scmp.eq.s32.totalorder %s40, 1
      %p394 = por %p392, %p393
      %p395 = scmp.ne.s32.totalorder %s386, %s387
      %p396 = scmp.eq.s32.totalorder %s40, 0
      %p397 = por %p395, %p396
      %p398 = scmp.ne.s32.totalorder %s386, %s387
      %p399 = scmp.eq.s32.totalorder %s41, 1
      %p400 = por %p398, %p399
      %p402 = scmp.ne.s32.totalorder %s387, %s401
      %p403 = scmp.eq.s32.totalorder %s41, 0
      %p404 = por %p402, %p403
      %s406 = sadd.s32 %s405, 1
      %p409 = scmp.eq.s32.totalorder %s35, 1
      %p410 = scmp.ne.s32.totalorder %s405, %s407
      %p411 = scmp.eq.s32.totalorder %s35, 0
      %p412 = por %p410, %p411
      %p413 = scmp.ne.s32.totalorder %s405, %s407
      %p414 = scmp.eq.s32.totalorder %s40, 1
      %p415 = por %p413, %p414
      %p416 = scmp.ne.s32.totalorder %s407, %s408
      %p417 = scmp.eq.s32.totalorder %s40, 0
      %p418 = por %p416, %p417
      %p419 = scmp.ne.s32.totalorder %s407, %s408
      %p420 = scmp.eq.s32.totalorder %s41, 1
      %p421 = por %p419, %p420
      %p423 = scmp.ne.s32.totalorder %s408, %s422
      %p424 = scmp.eq.s32.totalorder %s41, 0
      %p425 = por %p423, %p424
      %s427 = sadd.s32 %s426, 1
      %p430 = scmp.eq.s32.totalorder %s35, 1
      %p431 = scmp.ne.s32.totalorder %s426, %s428
      %p432 = scmp.eq.s32.totalorder %s35, 0
      %p433 = por %p431, %p432
      %p434 = scmp.ne.s32.totalorder %s426, %s428
      %p435 = scmp.eq.s32.totalorder %s40, 1
      %p436 = por %p434, %p435
      %p437 = scmp.ne.s32.totalorder %s428, %s429
      %p438 = scmp.eq.s32.totalorder %s40, 0
      %p439 = por %p437, %p438
      %p440 = scmp.ne.s32.totalorder %s428, %s429
      %p441 = scmp.eq.s32.totalorder %s41, 1
      %p442 = por %p440, %p441
      %p444 = scmp.ne.s32.totalorder %s429, %s443
      %p445 = scmp.eq.s32.totalorder %s41, 0
      %p446 = por %p444, %p445
      %s448 = sadd.s32 %s447, 1
      %p451 = scmp.eq.s32.totalorder %s35, 1
      %p452 = scmp.ne.s32.totalorder %s447, %s449
      %p453 = scmp.eq.s32.totalorder %s35, 0
      %p454 = por %p452, %p453
      %p455 = scmp.ne.s32.totalorder %s447, %s449
      %p456 = scmp.eq.s32.totalorder %s40, 1
      %p457 = por %p455, %p456
      %p458 = scmp.ne.s32.totalorder %s449, %s450
      %p459 = scmp.eq.s32.totalorder %s40, 0
      %p460 = por %p458, %p459
      %p461 = scmp.ne.s32.totalorder %s449, %s450
      %p462 = scmp.eq.s32.totalorder %s41, 1
      %p463 = por %p461, %p462
      %p465 = scmp.ne.s32.totalorder %s450, %s464
      %p466 = scmp.eq.s32.totalorder %s41, 0
      %p467 = por %p465, %p466
      %s469 = sadd.s32 %s468, 1
      %p472 = scmp.eq.s32.totalorder %s35, 1
      %p473 = scmp.ne.s32.totalorder %s468, %s470
      %p474 = scmp.eq.s32.totalorder %s35, 0
      %p475 = por %p473, %p474
      %p476 = scmp.ne.s32.totalorder %s468, %s470
      %p477 = scmp.eq.s32.totalorder %s40, 1
      %p478 = por %p476, %p477
      %p479 = scmp.ne.s32.totalorder %s470, %s471
      %p480 = scmp.eq.s32.totalorder %s40, 0
      %p481 = por %p479, %p480
      %p482 = scmp.ne.s32.totalorder %s470, %s471
      %p483 = scmp.eq.s32.totalorder %s41, 1
      %p484 = por %p482, %p483
      %p486 = scmp.ne.s32.totalorder %s471, %s485
      %p487 = scmp.eq.s32.totalorder %s41, 0
      %p488 = por %p486, %p487
      %s489 = ssub.s32 %s35, %s42
      %p490 = scmp.eq.s32.totalorder %s489, 0
      %s492 = sadd.s32 %s491, 1
      %s493 = scalar_select %p490, %s491, %s492
      %p496 = pneg %p490
      %p497 = scmp.eq.s32.totalorder %s35, 1
      %p498 = por %p496, %p497
      %p499 = scmp.ne.s32.totalorder %s491, %s494
      %p500 = scmp.eq.s32.totalorder %s35, 0
      %p501 = por %p499, %p500
      %p502 = scmp.ne.s32.totalorder %s491, %s494
      %p503 = scmp.eq.s32.totalorder %s40, 1
      %p504 = por %p502, %p503
      %p505 = scmp.ne.s32.totalorder %s494, %s495
      %p506 = scmp.eq.s32.totalorder %s40, 0
      %p507 = por %p505, %p506
      %p508 = scmp.ne.s32.totalorder %s494, %s495
      %p509 = scmp.eq.s32.totalorder %s41, 1
      %p510 = por %p508, %p509
      %p512 = scmp.ne.s32.totalorder %s495, %s511
      %p513 = scmp.eq.s32.totalorder %s41, 0
      %p514 = por %p512, %p513
      %s515 = ssub.s32 %s35, %s42
      %p516 = scmp.eq.s32.totalorder %s515, 0
      %s518 = sadd.s32 %s517, 1
      %s519 = scalar_select %p516, %s517, %s518
      %p522 = pneg %p516
      %p523 = scmp.eq.s32.totalorder %s35, 1
      %p524 = por %p522, %p523
      %p525 = scmp.ne.s32.totalorder %s517, %s520
      %p526 = scmp.eq.s32.totalorder %s35, 0
      %p527 = por %p525, %p526
      %p528 = scmp.ne.s32.totalorder %s517, %s520
      %p529 = scmp.eq.s32.totalorder %s40, 1
      %p530 = por %p528, %p529
      %p531 = scmp.ne.s32.totalorder %s520, %s521
      %p532 = scmp.eq.s32.totalorder %s40, 0
      %p533 = por %p531, %p532
      %p534 = scmp.ne.s32.totalorder %s520, %s521
      %p535 = scmp.eq.s32.totalorder %s41, 1
      %p536 = por %p534, %p535
      %p538 = scmp.ne.s32.totalorder %s521, %s537
      %p539 = scmp.eq.s32.totalorder %s41, 0
      %p540 = por %p538, %p539
      %s541 = ssub.s32 %s35, %s42
      %p542 = scmp.eq.s32.totalorder %s541, 0
      %s544 = sadd.s32 %s543, 1
      %s545 = scalar_select %p542, %s543, %s544
      %p548 = pneg %p542
      %p549 = scmp.eq.s32.totalorder %s35, 1
      %p550 = por %p548, %p549
      %p551 = scmp.ne.s32.totalorder %s543, %s546
      %p552 = scmp.eq.s32.totalorder %s35, 0
      %p553 = por %p551, %p552
      %p554 = scmp.ne.s32.totalorder %s543, %s546
      %p555 = scmp.eq.s32.totalorder %s40, 1
      %p556 = por %p554, %p555
      %p557 = scmp.ne.s32.totalorder %s546, %s547
      %p558 = scmp.eq.s32.totalorder %s40, 0
      %p559 = por %p557, %p558
      %p560 = scmp.ne.s32.totalorder %s546, %s547
      %p561 = scmp.eq.s32.totalorder %s41, 1
      %p562 = por %p560, %p561
      %p564 = scmp.ne.s32.totalorder %s547, %s563
      %p565 = scmp.eq.s32.totalorder %s41, 0
      %p566 = por %p564, %p565
      %p567 = scmp.le.s32.totalorder 1, %s35
      %p568 = scmp.lt.s32.totalorder %s35, 3
      %p569 = pnand %p567, %p568
      %p570 = pneg %p569
      // Predicated region
      $region9: #{tpu_custom_call.1} parent=5 // pred_check
        _
      $region10: #{tpu_custom_call.1} parent=5 // pred_check_branch
        %572 = sbr.rel (%p569) target = $region12
      $region11: #{tpu_custom_call.1} parent=5 // pred_region
        %s573 = ssub.s32 %s35, 1
        // Predicated region
        $region13: #{tpu_custom_call.1} parent=11 // pred_check
          %p574 = pneg %p82
        $region14: #{tpu_custom_call.1} parent=11 // pred_check_branch
          %576 = sbr.rel (%p574) target = $region16
        $region15: #{tpu_custom_call.1} parent=11 // pred_region
          _
        $region16: #{tpu_custom_call.1} parent=11 // pred_fallthru
          _
        // Predicated region
        $region17: #{tpu_custom_call.1} parent=11 // pred_check
          %p577 = pneg %p103
        $region18: #{tpu_custom_call.1} parent=11 // pred_check_branch
          %579 = sbr.rel (%p577) target = $region20
        $region19: #{tpu_custom_call.1} parent=11 // pred_region
          _
        $region20: #{tpu_custom_call.1} parent=11 // pred_fallthru
          _
        // Predicated region
        $region21: #{tpu_custom_call.1} parent=11 // pred_check
          %p580 = pneg %p124
        $region22: #{tpu_custom_call.1} parent=11 // pred_check_branch
          %582 = sbr.rel (%p580) target = $region24
        $region23: #{tpu_custom_call.1} parent=11 // pred_region
          _
        $region24: #{tpu_custom_call.1} parent=11 // pred_fallthru
          _
        // Predicated region
        $region25: #{tpu_custom_call.1} parent=11 // pred_check
          %p583 = pneg %p145
        $region26: #{tpu_custom_call.1} parent=11 // pred_check_branch
          %585 = sbr.rel (%p583) target = $region28
        $region27: #{tpu_custom_call.1} parent=11 // pred_region
          _
        $region28: #{tpu_custom_call.1} parent=11 // pred_fallthru
          _
        // Predicated region
        $region29: #{tpu_custom_call.1} parent=11 // pred_check
          %p586 = pneg %p166
        $region30: #{tpu_custom_call.1} parent=11 // pred_check_branch
          %588 = sbr.rel (%p586) target = $region32
        $region31: #{tpu_custom_call.1} parent=11 // pred_region
          _
        $region32: #{tpu_custom_call.1} parent=11 // pred_fallthru
          _
        // Predicated region
        $region33: #{tpu_custom_call.1} parent=11 // pred_check
          %p589 = pneg %p187
        $region34: #{tpu_custom_call.1} parent=11 // pred_check_branch
          %591 = sbr.rel (%p589) target = $region36
        $region35: #{tpu_custom_call.1} parent=11 // pred_region
          _
        $region36: #{tpu_custom_call.1} parent=11 // pred_fallthru
          _
        // Predicated region
        $region37: #{tpu_custom_call.1} parent=11 // pred_check
          %p592 = pneg %p208
        $region38: #{tpu_custom_call.1} parent=11 // pred_check_branch
          %594 = sbr.rel (%p592) target = $region40
        $region39: #{tpu_custom_call.1} parent=11 // pred_region
          _
        $region40: #{tpu_custom_call.1} parent=11 // pred_fallthru
          _
        // Predicated region
        $region41: #{tpu_custom_call.1} parent=11 // pred_check
          %p595 = pneg %p229
        $region42: #{tpu_custom_call.1} parent=11 // pred_check_branch
          %597 = sbr.rel (%p595) target = $region44
        $region43: #{tpu_custom_call.1} parent=11 // pred_region
          _
        $region44: #{tpu_custom_call.1} parent=11 // pred_fallthru
          _
        // Predicated region
        $region45: #{tpu_custom_call.1} parent=11 // pred_check
          %p598 = pneg %p250
        $region46: #{tpu_custom_call.1} parent=11 // pred_check_branch
          %600 = sbr.rel (%p598) target = $region48
        $region47: #{tpu_custom_call.1} parent=11 // pred_region
          _
        $region48: #{tpu_custom_call.1} parent=11 // pred_fallthru
          _
        // Predicated region
        $region49: #{tpu_custom_call.1} parent=11 // pred_check
          %p601 = pneg %p271
        $region50: #{tpu_custom_call.1} parent=11 // pred_check_branch
          %603 = sbr.rel (%p601) target = $region52
        $region51: #{tpu_custom_call.1} parent=11 // pred_region
          _
        $region52: #{tpu_custom_call.1} parent=11 // pred_fallthru
          _
        // Predicated region
        $region53: #{tpu_custom_call.1} parent=11 // pred_check
          %p604 = pneg %p292
        $region54: #{tpu_custom_call.1} parent=11 // pred_check_branch
          %606 = sbr.rel (%p604) target = $region56
        $region55: #{tpu_custom_call.1} parent=11 // pred_region
          _
        $region56: #{tpu_custom_call.1} parent=11 // pred_fallthru
          _
        // Predicated region
        $region57: #{tpu_custom_call.1} parent=11 // pred_check
          %p607 = pneg %p313
        $region58: #{tpu_custom_call.1} parent=11 // pred_check_branch
          %609 = sbr.rel (%p607) target = $region60
        $region59: #{tpu_custom_call.1} parent=11 // pred_region
          _
        $region60: #{tpu_custom_call.1} parent=11 // pred_fallthru
          _
        // Predicated region
        $region61: #{tpu_custom_call.1} parent=11 // pred_check
          %p610 = pneg %p334
        $region62: #{tpu_custom_call.1} parent=11 // pred_check_branch
          %612 = sbr.rel (%p610) target = $region64
        $region63: #{tpu_custom_call.1} parent=11 // pred_region
          _
        $region64: #{tpu_custom_call.1} parent=11 // pred_fallthru
          _
        // Predicated region
        $region65: #{tpu_custom_call.1} parent=11 // pred_check
          %p613 = pneg %p355
        $region66: #{tpu_custom_call.1} parent=11 // pred_check_branch
          %615 = sbr.rel (%p613) target = $region68
        $region67: #{tpu_custom_call.1} parent=11 // pred_region
          _
        $region68: #{tpu_custom_call.1} parent=11 // pred_fallthru
          _
        // Predicated region
        $region69: #{tpu_custom_call.1} parent=11 // pred_check
          %p616 = pneg %p376
        $region70: #{tpu_custom_call.1} parent=11 // pred_check_branch
          %618 = sbr.rel (%p616) target = $region72
        $region71: #{tpu_custom_call.1} parent=11 // pred_region
          _
        $region72: #{tpu_custom_call.1} parent=11 // pred_fallthru
          _
        // Predicated region
        $region73: #{tpu_custom_call.1} parent=11 // pred_check
          %p619 = pneg %p397
        $region74: #{tpu_custom_call.1} parent=11 // pred_check_branch
          %621 = sbr.rel (%p619) target = $region76
        $region75: #{tpu_custom_call.1} parent=11 // pred_region
          _
        $region76: #{tpu_custom_call.1} parent=11 // pred_fallthru
          _
        // Predicated region
        $region77: #{tpu_custom_call.1} parent=11 // pred_check
          %p622 = pneg %p418
        $region78: #{tpu_custom_call.1} parent=11 // pred_check_branch
          %624 = sbr.rel (%p622) target = $region80
        $region79: #{tpu_custom_call.1} parent=11 // pred_region
          _
        $region80: #{tpu_custom_call.1} parent=11 // pred_fallthru
          _
        // Predicated region
        $region81: #{tpu_custom_call.1} parent=11 // pred_check
          %p625 = pneg %p439
        $region82: #{tpu_custom_call.1} parent=11 // pred_check_branch
          %627 = sbr.rel (%p625) target = $region84
        $region83: #{tpu_custom_call.1} parent=11 // pred_region
          _
        $region84: #{tpu_custom_call.1} parent=11 // pred_fallthru
          _
        // Predicated region
        $region85: #{tpu_custom_call.1} parent=11 // pred_check
          %p628 = pneg %p460
        $region86: #{tpu_custom_call.1} parent=11 // pred_check_branch
          %630 = sbr.rel (%p628) target = $region88
        $region87: #{tpu_custom_call.1} parent=11 // pred_region
          _
        $region88: #{tpu_custom_call.1} parent=11 // pred_fallthru
          _
        // Predicated region
        $region89: #{tpu_custom_call.1} parent=11 // pred_check
          %p631 = pneg %p481
        $region90: #{tpu_custom_call.1} parent=11 // pred_check_branch
          %633 = sbr.rel (%p631) target = $region92
        $region91: #{tpu_custom_call.1} parent=11 // pred_region
          _
        $region92: #{tpu_custom_call.1} parent=11 // pred_fallthru
          _
      $region12: #{tpu_custom_call.1} parent=5 // pred_fallthru
        _
      %p634 = scmp.lt.s32.totalorder %s35, 2
      // Predicated region
      $region93: #{tpu_custom_call.1} parent=5 // pred_check
        %p635 = pneg %p634
      $region94: #{tpu_custom_call.1} parent=5 // pred_check_branch
        %637 = sbr.rel (%p635) target = $region96
      $region95: #{tpu_custom_call.1} parent=5 // pred_region
        // Predicated region
        $region97: #{tpu_custom_call.1} parent=95 // pred_check
          %p638 = pneg %p55
        $region98: #{tpu_custom_call.1} parent=95 // pred_check_branch
          %640 = sbr.rel (%p638) target = $region100
        $region99: #{tpu_custom_call.1} parent=95 // pred_region
          %p641 = scmp.lt.s32.totalorder %s35, 1
          %s642 = scalar_select %p641, %s35, 1
          %s643 = smul.addr %s642, 4
          %s644 = scalar_lea.vmem %s0, %s643
        $region100: #{tpu_custom_call.1} parent=95 // pred_fallthru
          _
      $region96: #{tpu_custom_call.1} parent=5 // pred_fallthru
        _
      %p645 = scmp.le.s32.totalorder 1, %s35
      %p646 = scmp.lt.s32.totalorder %s35, 3
      %p647 = pnand %p645, %p646
      %p648 = pneg %p647
      // Predicated region
      $region101: #{tpu_custom_call.1} parent=5 // pred_check
        _
      $region102: #{tpu_custom_call.1} parent=5 // pred_check_branch
        %650 = sbr.rel (%p647) target = $region104
      $region103: #{tpu_custom_call.1} parent=5 // pred_region
        %s651 = ssub.s32 %s35, 1
        %p652 = scmp.lt.s32.totalorder %s40, 1
        %s653 = scalar_select %p652, %s40, 1
        %s654 = smul.addr %s653, 4
        %s655 = scalar_lea.vmem %s0, %s654
        %p656 = pneg %p61
        %p657 = pneg %p58
        %p658 = pneg %p82
        %p659 = pneg %p79
        %p660 = pneg %p103
        %p661 = pneg %p100
        %p662 = pneg %p124
        %p663 = pneg %p121
        %p664 = pneg %p145
        %p665 = pneg %p142
        %p666 = pneg %p166
        %p667 = pneg %p163
        %p668 = pneg %p187
        %p669 = pneg %p184
        %p670 = pneg %p208
        %p671 = pneg %p205
        %p672 = pneg %p229
        %p673 = pneg %p226
        %p674 = pneg %p250
        %p675 = pneg %p247
        %p676 = pneg %p271
        %p677 = pneg %p268
        %p678 = pneg %p292
        %p679 = pneg %p289
        %p680 = pneg %p313
        %p681 = pneg %p310
        %p682 = pneg %p334
        %p683 = pneg %p331
        %p684 = pneg %p355
        %p685 = pneg %p352
        %p686 = pneg %p376
        %p687 = pneg %p373
        %p688 = pneg %p397
        %p689 = pneg %p394
        %p690 = pneg %p418
        %p691 = pneg %p415
        %p692 = pneg %p439
        %p693 = pneg %p436
        %p694 = pneg %p460
        %p695 = pneg %p457
        %p696 = pneg %p481
        %p697 = pneg %p478
        %p698 = pneg %p507
        %p699 = pneg %p504
        %p700 = scmp.lt.s32.totalorder %s40, 1
        %s701 = scalar_select %p700, %s40, 1
        %s702 = smul.addr %s701, 8
        %s703 = scalar_lea.vmem %s21, %s702
        %p704 = pneg %p533
        %p705 = pneg %p530
        %p706 = scmp.lt.s32.totalorder %s40, 1
        %s707 = scalar_select %p706, %s40, 1
        %s708 = smul.addr %s707, 8
        %s709 = scalar_lea.vmem %s22, %s708
        %p710 = pneg %p559
        %p711 = pneg %p556
        %s712 = sand.u32 %s546, 1
        %s713 = scalar_lea.sflag [#allocation4], %s712
        %s714 = sand.u32 %s546, 1
        %s715 = scalar_lea.vmem [#allocation3], %s714
        %p716 = scmp.lt.s32.totalorder %s40, 1
        %s717 = scalar_select %p716, %s40, 1
        %s718 = smul.addr %s717, 4
        %s719 = scalar_lea.vmem %s0, %s718
        %p720 = scmp.lt.s32.totalorder %s40, 1
        %s721 = scalar_select %p720, %s40, 1
        %s722 = smul.addr %s721, 8
        %s723 = scalar_lea.vmem %s21, %s722
        %p724 = scmp.lt.s32.totalorder %s40, 1
        %s725 = scalar_select %p724, %s40, 1
        %s726 = smul.addr %s725, 8
        %s727 = scalar_lea.vmem %s22, %s726
        %v728 = vld [vmem:[%s719] sm:$0xf]
        %v729 = vld [vmem:[%s1] sm:$0xff]
        %v730 = vld [vmem:[%s1 + $0x8] sm:$0xff]
        %v731 = vld [vmem:[%s2] sm:$0xff]
        %v732 = vld [vmem:[%s2 + $0x8] sm:$0xff]
        %v733 = vld [vmem:[%s3] sm:$0xff]
        %v734 = vld [vmem:[%s3 + $0x8] sm:$0xff]
        %736 = vrot.lane.b32.xlu0 %v728, 127
        %v737 = vpop.permute.xlu0 %736
        %vm738 = vcmask 31744
        %v740 = vsel %vm738, %v731, 0
        %v743 = vsel %vm738, %v732, 0
        %vm745 = vcmask 1043456
        %v746 = vsel %vm745, %v737, 0
        %748 = vmatprep.subr.mxu0 0.0
        %749 = vmatpush1.msra.mxu0 0.0
        %750 = vmatprep.subr.mxu0 0.0
        %751 = vmatpush1.msra.mxu0 0.0
        %752 = vmatprep.subr.mxu0 0.0
        %753 = vmatpush1.msra.mxu0 0.0
        %754 = vmatprep.subr.mxu0 0.0
        %755 = vmatpush1.msra.mxu0 0.0
        %756 = vmatprep.subr.mxu0 0.0
        %757 = vmatpush1.msra.mxu0 0.0
        %758 = vmatprep.subr.mxu0 0.0
        %759 = vmatpush1.msra.mxu0 0.0
        %760 = vmatprep.subr.mxu0 0.0
        %761 = vmatpush1.msra.mxu0 0.0
        %762 = vmatprep.subr.mxu0 0.0
        %763 = vmatpush1.msra.mxu0 0.0
        %764 = vmatprep.subr.mxu0 0.0
        %765 = vmatpush1.msra.mxu0 0.0
        %766 = vmatprep.subr.mxu0 0.0
        %767 = vmatpush1.msra.mxu0 0.0
        %768 = vmatprep.subr.mxu0 0.0
        %769 = vmatpush1.msra.mxu0 0.0
        %770 = vmatprep.subr.mxu0 0.0
        %771 = vmatpush1.msra.mxu0 0.0
        %772 = vmatprep.subr.mxu0 0.0
        %773 = vmatpush1.msra.mxu0 0.0
        %774 = vmatprep.subr.mxu0 0.0
        %775 = vmatpush1.msra.mxu0 0.0
        %776 = vmatprep.subr.mxu0 0.0
        %777 = vmatpush1.msra.mxu0 0.0
        %778 = vmatprep.subr.mxu0 0.0
        %779 = vmatpush1.msra.mxu0 %v746
        %780 = vmatprep.subr.mxu0 0.0
        %781 = vmatpush2.msra.mxu0 0.0
        %782 = vmatprep.subr.mxu0 0.0
        %783 = vmatpush2.msra.mxu0 0.0
        %784 = vmatprep.subr.mxu0 0.0
        %785 = vmatpush2.msra.mxu0 0.0
        %786 = vmatprep.subr.mxu0 0.0
        %787 = vmatpush2.msra.mxu0 0.0
        %788 = vmatprep.subr.mxu0 0.0
        %789 = vmatpush2.msra.mxu0 0.0
        %790 = vmatprep.subr.mxu0 0.0
        %791 = vmatpush2.msra.mxu0 0.0
        %792 = vmatprep.subr.mxu0 0.0
        %793 = vmatpush2.msra.mxu0 0.0
        %794 = vmatprep.subr.mxu0 0.0
        %795 = vmatpush2.msra.mxu0 0.0
        %796 = vmatprep.subr.mxu0 0.0
        %797 = vmatpush2.msra.mxu0 0.0
        %798 = vmatprep.subr.mxu0 0.0
        %799 = vmatpush2.msra.mxu0 0.0
        %800 = vmatprep.subr.mxu0 0.0
        %801 = vmatpush2.msra.mxu0 0.0
        %802 = vmatprep.subr.mxu0 0.0
        %803 = vmatpush2.msra.mxu0 0.0
        %804 = vmatprep.subr.mxu0 0.0
        %805 = vmatpush2.msra.mxu0 0.0
        %806 = vmatprep.subr.mxu0 0.0
        %807 = vmatpush2.msra.mxu0 0.0
        %808 = vmatprep.subr.mxu0 0.0
        %809 = vmatpush2.msra.mxu0 0.0
        %810 = vmatprep.subr.mxu0 0.0
        %811 = vmatpush2.msra.mxu0 0.0
        %812 = vmatprep.mubr.f32.mxu0 0.0
        %813 = vmatmul.mubr.f32.gmra.mxu0 %v740
        %v814 = vpop.f32.mrf.mxu0
        %v815 = vadd.f32 0.0, %v814
        %v816 = vpop.f32.mrf.mxu0
        %817 = vmatprep.mubr.f32.mxu0 0.0
        %818 = vmatmul.mubr.f32.gmra.mxu0 %v743
        %v819 = vpop.f32.mrf.mxu0
        %v820 = vadd.f32 0.0, %v819
        %v821 = vpop.f32.mrf.mxu0
        %822 = vdwg.mxu0
        %v824 = vsel %vm738, %v729, 0
        %v827 = vsel %vm738, %v730, 0
        %v829 = vsel %vm745, %v728, 0
        %831 = vmatprep.subr.mxu0 0.0
        %832 = vmatpush1.msra.mxu0 0.0
        %833 = vmatprep.subr.mxu0 0.0
        %834 = vmatpush1.msra.mxu0 0.0
        %835 = vmatprep.subr.mxu0 0.0
        %836 = vmatpush1.msra.mxu0 0.0
        %837 = vmatprep.subr.mxu0 0.0
        %838 = vmatpush1.msra.mxu0 0.0
        %839 = vmatprep.subr.mxu0 0.0
        %840 = vmatpush1.msra.mxu0 0.0
        %841 = vmatprep.subr.mxu0 0.0
        %842 = vmatpush1.msra.mxu0 0.0
        %843 = vmatprep.subr.mxu0 0.0
        %844 = vmatpush1.msra.mxu0 0.0
        %845 = vmatprep.subr.mxu0 0.0
        %846 = vmatpush1.msra.mxu0 0.0
        %847 = vmatprep.subr.mxu0 0.0
        %848 = vmatpush1.msra.mxu0 0.0
        %849 = vmatprep.subr.mxu0 0.0
        %850 = vmatpush1.msra.mxu0 0.0
        %851 = vmatprep.subr.mxu0 0.0
        %852 = vmatpush1.msra.mxu0 0.0
        %853 = vmatprep.subr.mxu0 0.0
        %854 = vmatpush1.msra.mxu0 0.0
        %855 = vmatprep.subr.mxu0 0.0
        %856 = vmatpush1.msra.mxu0 0.0
        %857 = vmatprep.subr.mxu0 0.0
        %858 = vmatpush1.msra.mxu0 0.0
        %859 = vmatprep.subr.mxu0 0.0
        %860 = vmatpush1.msra.mxu0 0.0
        %861 = vmatprep.subr.mxu0 0.0
        %862 = vmatpush1.msra.mxu0 %v829
        %863 = vmatprep.subr.mxu0 0.0
        %864 = vmatpush2.msra.mxu0 0.0
        %865 = vmatprep.subr.mxu0 0.0
        %866 = vmatpush2.msra.mxu0 0.0
        %867 = vmatprep.subr.mxu0 0.0
        %868 = vmatpush2.msra.mxu0 0.0
        %869 = vmatprep.subr.mxu0 0.0
        %870 = vmatpush2.msra.mxu0 0.0
        %871 = vmatprep.subr.mxu0 0.0
        %872 = vmatpush2.msra.mxu0 0.0
        %873 = vmatprep.subr.mxu0 0.0
        %874 = vmatpush2.msra.mxu0 0.0
        %875 = vmatprep.subr.mxu0 0.0
        %876 = vmatpush2.msra.mxu0 0.0
        %877 = vmatprep.subr.mxu0 0.0
        %878 = vmatpush2.msra.mxu0 0.0
        %879 = vmatprep.subr.mxu0 0.0
        %880 = vmatpush2.msra.mxu0 0.0
        %881 = vmatprep.subr.mxu0 0.0
        %882 = vmatpush2.msra.mxu0 0.0
        %883 = vmatprep.subr.mxu0 0.0
        %884 = vmatpush2.msra.mxu0 0.0
        %885 = vmatprep.subr.mxu0 0.0
        %886 = vmatpush2.msra.mxu0 0.0
        %887 = vmatprep.subr.mxu0 0.0
        %888 = vmatpush2.msra.mxu0 0.0
        %889 = vmatprep.subr.mxu0 0.0
        %890 = vmatpush2.msra.mxu0 0.0
        %891 = vmatprep.subr.mxu0 0.0
        %892 = vmatpush2.msra.mxu0 0.0
        %893 = vmatprep.subr.mxu0 0.0
        %894 = vmatpush2.msra.mxu0 0.0
        %895 = vmatprep.mubr.f32.mxu0 0.0
        %896 = vmatmul.mubr.f32.gmra.mxu0 %v824
        %v897 = vpop.f32.mrf.mxu0
        %v898 = vadd.f32 %v815, %v897
        %v899 = vpop.f32.mrf.mxu0
        %900 = vmatprep.mubr.f32.mxu0 0.0
        %901 = vmatmul.mubr.f32.gmra.mxu0 %v827
        %v902 = vpop.f32.mrf.mxu0
        %v903 = vadd.f32 %v820, %v902
        %v904 = vpop.f32.mrf.mxu0
        %905 = vdwg.mxu0
        %907 = vset.pattern.permute.xlu0 0
        %908 = vperm.xlu0 %907, %v733
        %v909 = vpop.permute.xlu0 %908
        %912 = vset.pattern.permute.xlu0 0
        %913 = vperm.xlu0 %912, %v734
        %v914 = vpop.permute.xlu0 %913
        %v916 = vadd.f32 %v898, %v909
        %v917 = vadd.f32 %v903, %v914
        %v918 = vmax.f32 %v916, 0.0
        %v919 = vmax.f32 %v917, 0.0
        %v920 = vlaneseq
        %v921 = vand.u32 %v920, 127
        %vm922 = vcmp.ge.s32.totalorder %v921, 5
        %v923 = vsel %vm922, %v918, 0.0
        %v924 = vsel %vm922, %v919, 0.0
        %v925 = vld [vmem:[%s4] sm:$0xff]
        %v926 = vld [vmem:[%s4 + $0x8] sm:$0xff]
        %v927 = vld [vmem:[%s5] sm:$0xff]
        %v928 = vld [vmem:[%s5 + $0x8] sm:$0xff]
        %v929 = vld [vmem:[%s6] sm:$0xff]
        %v930 = vld [vmem:[%s6 + $0x8] sm:$0xff]
        %933 = vrot.lane.b32.xlu0 %v923, 127
        %v934 = vpop.permute.xlu0 %933
        %935 = vrot.lane.b32.xlu0 %v924, 127
        %v936 = vpop.permute.xlu0 %935
        %vm939 = vcmask 130048
        %v941 = vsel %vm939, %v927, 0
        %v944 = vsel %vm939, %v928, 0
        %946 = vmatprep.subr.mxu0 0.0
        %947 = vmatpush1.msra.mxu0 0.0
        %948 = vmatprep.subr.mxu0 0.0
        %949 = vmatpush1.msra.mxu0 0.0
        %950 = vmatprep.subr.mxu0 0.0
        %951 = vmatpush1.msra.mxu0 0.0
        %952 = vmatprep.subr.mxu0 0.0
        %953 = vmatpush1.msra.mxu0 0.0
        %954 = vmatprep.subr.mxu0 0.0
        %955 = vmatpush1.msra.mxu0 0.0
        %956 = vmatprep.subr.mxu0 0.0
        %957 = vmatpush1.msra.mxu0 0.0
        %958 = vmatprep.subr.mxu0 0.0
        %959 = vmatpush1.msra.mxu0 0.0
        %960 = vmatprep.subr.mxu0 0.0
        %961 = vmatpush1.msra.mxu0 0.0
        %962 = vmatprep.subr.mxu0 0.0
        %963 = vmatpush1.msra.mxu0 0.0
        %964 = vmatprep.subr.mxu0 0.0
        %965 = vmatpush1.msra.mxu0 0.0
        %966 = vmatprep.subr.mxu0 0.0
        %967 = vmatpush1.msra.mxu0 0.0
        %968 = vmatprep.subr.mxu0 0.0
        %969 = vmatpush1.msra.mxu0 0.0
        %970 = vmatprep.subr.mxu0 0.0
        %971 = vmatpush1.msra.mxu0 0.0
        %972 = vmatprep.subr.mxu0 0.0
        %973 = vmatpush1.msra.mxu0 0.0
        %974 = vmatprep.subr.mxu0 0.0
        %975 = vmatpush1.msra.mxu0 %v936
        %976 = vmatprep.subr.mxu0 0.0
        %977 = vmatpush1.msra.mxu0 %v934
        %978 = vmatprep.subr.mxu0 0.0
        %979 = vmatpush2.msra.mxu0 0.0
        %980 = vmatprep.subr.mxu0 0.0
        %981 = vmatpush2.msra.mxu0 0.0
        %982 = vmatprep.subr.mxu0 0.0
        %983 = vmatpush2.msra.mxu0 0.0
        %984 = vmatprep.subr.mxu0 0.0
        %985 = vmatpush2.msra.mxu0 0.0
        %986 = vmatprep.subr.mxu0 0.0
        %987 = vmatpush2.msra.mxu0 0.0
        %988 = vmatprep.subr.mxu0 0.0
        %989 = vmatpush2.msra.mxu0 0.0
        %990 = vmatprep.subr.mxu0 0.0
        %991 = vmatpush2.msra.mxu0 0.0
        %992 = vmatprep.subr.mxu0 0.0
        %993 = vmatpush2.msra.mxu0 0.0
        %994 = vmatprep.subr.mxu0 0.0
        %995 = vmatpush2.msra.mxu0 0.0
        %996 = vmatprep.subr.mxu0 0.0
        %997 = vmatpush2.msra.mxu0 0.0
        %998 = vmatprep.subr.mxu0 0.0
        %999 = vmatpush2.msra.mxu0 0.0
        %1000 = vmatprep.subr.mxu0 0.0
        %1001 = vmatpush2.msra.mxu0 0.0
        %1002 = vmatprep.subr.mxu0 0.0
        %1003 = vmatpush2.msra.mxu0 0.0
        %1004 = vmatprep.subr.mxu0 0.0
        %1005 = vmatpush2.msra.mxu0 0.0
        %1006 = vmatprep.subr.mxu0 0.0
        %1007 = vmatpush2.msra.mxu0 0.0
        %1008 = vmatprep.subr.mxu0 0.0
        %1009 = vmatpush2.msra.mxu0 0.0
        %1010 = vmatprep.mubr.f32.mxu0 0.0
        %1011 = vmatmul.mubr.f32.gmra.mxu0 %v941
        %v1012 = vpop.f32.mrf.mxu0
        %v1013 = vadd.f32 0.0, %v1012
        %v1014 = vpop.f32.mrf.mxu0
        %1015 = vmatprep.mubr.f32.mxu0 0.0
        %1016 = vmatmul.mubr.f32.gmra.mxu0 %v944
        %v1017 = vpop.f32.mrf.mxu0
        %v1018 = vadd.f32 0.0, %v1017
        %v1019 = vpop.f32.mrf.mxu0
        %1020 = vdwg.mxu0
        %v1022 = vsel %vm939, %v925, 0
        %v1025 = vsel %vm939, %v926, 0
        %1027 = vmatprep.subr.mxu0 0.0
        %1028 = vmatpush1.msra.mxu0 0.0
        %1029 = vmatprep.subr.mxu0 0.0
        %1030 = vmatpush1.msra.mxu0 0.0
        %1031 = vmatprep.subr.mxu0 0.0
        %1032 = vmatpush1.msra.mxu0 0.0
        %1033 = vmatprep.subr.mxu0 0.0
        %1034 = vmatpush1.msra.mxu0 0.0
        %1035 = vmatprep.subr.mxu0 0.0
        %1036 = vmatpush1.msra.mxu0 0.0
        %1037 = vmatprep.subr.mxu0 0.0
        %1038 = vmatpush1.msra.mxu0 0.0
        %1039 = vmatprep.subr.mxu0 0.0
        %1040 = vmatpush1.msra.mxu0 0.0
        %1041 = vmatprep.subr.mxu0 0.0
        %1042 = vmatpush1.msra.mxu0 0.0
        %1043 = vmatprep.subr.mxu0 0.0
        %1044 = vmatpush1.msra.mxu0 0.0
        %1045 = vmatprep.subr.mxu0 0.0
        %1046 = vmatpush1.msra.mxu0 0.0
        %1047 = vmatprep.subr.mxu0 0.0
        %1048 = vmatpush1.msra.mxu0 0.0
        %1049 = vmatprep.subr.mxu0 0.0
        %1050 = vmatpush1.msra.mxu0 0.0
        %1051 = vmatprep.subr.mxu0 0.0
        %1052 = vmatpush1.msra.mxu0 0.0
        %1053 = vmatprep.subr.mxu0 0.0
        %1054 = vmatpush1.msra.mxu0 0.0
        %1055 = vmatprep.subr.mxu0 0.0
        %1056 = vmatpush1.msra.mxu0 %v924
        %1057 = vmatprep.subr.mxu0 0.0
        %1058 = vmatpush1.msra.mxu0 %v923
        %1059 = vmatprep.subr.mxu0 0.0
        %1060 = vmatpush2.msra.mxu0 0.0
        %1061 = vmatprep.subr.mxu0 0.0
        %1062 = vmatpush2.msra.mxu0 0.0
        %1063 = vmatprep.subr.mxu0 0.0
        %1064 = vmatpush2.msra.mxu0 0.0
        %1065 = vmatprep.subr.mxu0 0.0
        %1066 = vmatpush2.msra.mxu0 0.0
        %1067 = vmatprep.subr.mxu0 0.0
        %1068 = vmatpush2.msra.mxu0 0.0
        %1069 = vmatprep.subr.mxu0 0.0
        %1070 = vmatpush2.msra.mxu0 0.0
        %1071 = vmatprep.subr.mxu0 0.0
        %1072 = vmatpush2.msra.mxu0 0.0
        %1073 = vmatprep.subr.mxu0 0.0
        %1074 = vmatpush2.msra.mxu0 0.0
        %1075 = vmatprep.subr.mxu0 0.0
        %1076 = vmatpush2.msra.mxu0 0.0
        %1077 = vmatprep.subr.mxu0 0.0
        %1078 = vmatpush2.msra.mxu0 0.0
        %1079 = vmatprep.subr.mxu0 0.0
        %1080 = vmatpush2.msra.mxu0 0.0
        %1081 = vmatprep.subr.mxu0 0.0
        %1082 = vmatpush2.msra.mxu0 0.0
        %1083 = vmatprep.subr.mxu0 0.0
        %1084 = vmatpush2.msra.mxu0 0.0
        %1085 = vmatprep.subr.mxu0 0.0
        %1086 = vmatpush2.msra.mxu0 0.0
        %1087 = vmatprep.subr.mxu0 0.0
        %1088 = vmatpush2.msra.mxu0 0.0
        %1089 = vmatprep.subr.mxu0 0.0
        %1090 = vmatpush2.msra.mxu0 0.0
        %1091 = vmatprep.mubr.f32.mxu0 0.0
        %1092 = vmatmul.mubr.f32.gmra.mxu0 %v1022
        %v1093 = vpop.f32.mrf.mxu0
        %v1094 = vadd.f32 %v1013, %v1093
        %v1095 = vpop.f32.mrf.mxu0
        %1096 = vmatprep.mubr.f32.mxu0 0.0
        %1097 = vmatmul.mubr.f32.gmra.mxu0 %v1025
        %v1098 = vpop.f32.mrf.mxu0
        %v1099 = vadd.f32 %v1018, %v1098
        %v1100 = vpop.f32.mrf.mxu0
        %1101 = vdwg.mxu0
        %1103 = vset.pattern.permute.xlu0 0
        %1104 = vperm.xlu0 %1103, %v929
        %v1105 = vpop.permute.xlu0 %1104
        %1108 = vset.pattern.permute.xlu0 0
        %1109 = vperm.xlu0 %1108, %v930
        %v1110 = vpop.permute.xlu0 %1109
        %v1112 = vadd.f32 %v1094, %v1105
        %v1113 = vadd.f32 %v1099, %v1110
        %v1114 = vmax.f32 %v1112, 0.0
        %v1115 = vmax.f32 %v1113, 0.0
        %vm1116 = vcmp.ge.s32.totalorder %v921, 4
        %v1117 = vsel %vm1116, %v1114, 0.0
        %v1118 = vsel %vm1116, %v1115, 0.0
        %v1119 = vld [vmem:[%s7] sm:$0xff]
        %v1120 = vld [vmem:[%s7 + $0x8] sm:$0xff]
        %v1121 = vld [vmem:[%s8] sm:$0xff]
        %v1122 = vld [vmem:[%s8 + $0x8] sm:$0xff]
        %1124 = vset.pattern.permute.xlu0 0
        %1125 = vperm.xlu0 %1124, %v1121
        %v1126 = vpop.permute.xlu0 %1125
        %1129 = vset.pattern.permute.xlu0 0
        %1130 = vperm.xlu0 %1129, %v1122
        %v1131 = vpop.permute.xlu0 %1130
        %1133 = vrot.lane.b32.xlu0 %v728, 126
        %v1134 = vpop.permute.xlu0 %1133
        %v1136 = vsel %vm738, %v1119, 0
        %v1139 = vsel %vm738, %v1120, 0
        %v1141 = vsel %vm745, %v1134, 0
        %1143 = vmatprep.subr.mxu0 0.0
        %1144 = vmatpush1.msra.mxu0 0.0
        %1145 = vmatprep.subr.mxu0 0.0
        %1146 = vmatpush1.msra.mxu0 0.0
        %1147 = vmatprep.subr.mxu0 0.0
        %1148 = vmatpush1.msra.mxu0 0.0
        %1149 = vmatprep.subr.mxu0 0.0
        %1150 = vmatpush1.msra.mxu0 0.0
        %1151 = vmatprep.subr.mxu0 0.0
        %1152 = vmatpush1.msra.mxu0 0.0
        %1153 = vmatprep.subr.mxu0 0.0
        %1154 = vmatpush1.msra.mxu0 0.0
        %1155 = vmatprep.subr.mxu0 0.0
        %1156 = vmatpush1.msra.mxu0 0.0
        %1157 = vmatprep.subr.mxu0 0.0
        %1158 = vmatpush1.msra.mxu0 0.0
        %1159 = vmatprep.subr.mxu0 0.0
        %1160 = vmatpush1.msra.mxu0 0.0
        %1161 = vmatprep.subr.mxu0 0.0
        %1162 = vmatpush1.msra.mxu0 0.0
        %1163 = vmatprep.subr.mxu0 0.0
        %1164 = vmatpush1.msra.mxu0 0.0
        %1165 = vmatprep.subr.mxu0 0.0
        %1166 = vmatpush1.msra.mxu0 0.0
        %1167 = vmatprep.subr.mxu0 0.0
        %1168 = vmatpush1.msra.mxu0 0.0
        %1169 = vmatprep.subr.mxu0 0.0
        %1170 = vmatpush1.msra.mxu0 0.0
        %1171 = vmatprep.subr.mxu0 0.0
        %1172 = vmatpush1.msra.mxu0 0.0
        %1173 = vmatprep.subr.mxu0 0.0
        %1174 = vmatpush1.msra.mxu0 %v1141
        %1175 = vmatprep.subr.mxu0 0.0
        %1176 = vmatpush2.msra.mxu0 0.0
        %1177 = vmatprep.subr.mxu0 0.0
        %1178 = vmatpush2.msra.mxu0 0.0
        %1179 = vmatprep.subr.mxu0 0.0
        %1180 = vmatpush2.msra.mxu0 0.0
        %1181 = vmatprep.subr.mxu0 0.0
        %1182 = vmatpush2.msra.mxu0 0.0
        %1183 = vmatprep.subr.mxu0 0.0
        %1184 = vmatpush2.msra.mxu0 0.0
        %1185 = vmatprep.subr.mxu0 0.0
        %1186 = vmatpush2.msra.mxu0 0.0
        %1187 = vmatprep.subr.mxu0 0.0
        %1188 = vmatpush2.msra.mxu0 0.0
        %1189 = vmatprep.subr.mxu0 0.0
        %1190 = vmatpush2.msra.mxu0 0.0
        %1191 = vmatprep.subr.mxu0 0.0
        %1192 = vmatpush2.msra.mxu0 0.0
        %1193 = vmatprep.subr.mxu0 0.0
        %1194 = vmatpush2.msra.mxu0 0.0
        %1195 = vmatprep.subr.mxu0 0.0
        %1196 = vmatpush2.msra.mxu0 0.0
        %1197 = vmatprep.subr.mxu0 0.0
        %1198 = vmatpush2.msra.mxu0 0.0
        %1199 = vmatprep.subr.mxu0 0.0
        %1200 = vmatpush2.msra.mxu0 0.0
        %1201 = vmatprep.subr.mxu0 0.0
        %1202 = vmatpush2.msra.mxu0 0.0
        %1203 = vmatprep.subr.mxu0 0.0
        %1204 = vmatpush2.msra.mxu0 0.0
        %1205 = vmatprep.subr.mxu0 0.0
        %1206 = vmatpush2.msra.mxu0 0.0
        %1207 = vmatprep.mubr.f32.mxu0 0.0
        %1208 = vmatmul.mubr.f32.gmra.mxu0 %v1136
        %v1209 = vpop.f32.mrf.mxu0
        %v1210 = vadd.f32 %v1126, %v1209
        %v1211 = vpop.f32.mrf.mxu0
        %1212 = vmatprep.mubr.f32.mxu0 0.0
        %1213 = vmatmul.mubr.f32.gmra.mxu0 %v1139
        %v1214 = vpop.f32.mrf.mxu0
        %v1215 = vadd.f32 %v1131, %v1214
        %v1216 = vpop.f32.mrf.mxu0
        %1217 = vdwg.mxu0
        %v1218 = vadd.f32 %v1117, %v1210
        %v1219 = vadd.f32 %v1118, %v1215
        %v1220 = vmax.f32 %v1218, 0.0
        %v1221 = vmax.f32 %v1219, 0.0
        %v1222 = vsel %vm1116, %v1220, 0.0
        %v1223 = vsel %vm1116, %v1221, 0.0
        %v1224 = vld [vmem:[%s9] sm:$0xff]
        %v1225 = vld [vmem:[%s9 + $0x8] sm:$0xff]
        %v1226 = vld [vmem:[%s9 + $0x10] sm:$0xff]
        %v1227 = vld [vmem:[%s9 + $0x18] sm:$0xff]
        %v1228 = vld [vmem:[%s10] sm:$0xff]
        %v1229 = vld [vmem:[%s10 + $0x8] sm:$0xff]
        %v1230 = vld [vmem:[%s10 + $0x10] sm:$0xff]
        %v1231 = vld [vmem:[%s10 + $0x18] sm:$0xff]
        %v1232 = vld [vmem:[%s11] sm:$0xff]
        %v1233 = vld [vmem:[%s11 + $0x8] sm:$0xff]
        %v1234 = vld [vmem:[%s11 + $0x10] sm:$0xff]
        %v1235 = vld [vmem:[%s11 + $0x18] sm:$0xff]
        %1238 = vrot.lane.b32.xlu0 %v1222, 126
        %v1239 = vpop.permute.xlu0 %1238
        %1240 = vrot.lane.b32.xlu0 %v1223, 126
        %v1241 = vpop.permute.xlu0 %1240
        %v1245 = vsel %vm939, %v1228, 0
        %v1248 = vsel %vm939, %v1229, 0
        %v1251 = vsel %vm939, %v1230, 0
        %v1254 = vsel %vm939, %v1231, 0
        %1256 = vmatprep.subr.mxu0 0.0
        %1257 = vmatpush1.msra.mxu0 0.0
        %1258 = vmatprep.subr.mxu0 0.0
        %1259 = vmatpush1.msra.mxu0 0.0
        %1260 = vmatprep.subr.mxu0 0.0
        %1261 = vmatpush1.msra.mxu0 0.0
        %1262 = vmatprep.subr.mxu0 0.0
        %1263 = vmatpush1.msra.mxu0 0.0
        %1264 = vmatprep.subr.mxu0 0.0
        %1265 = vmatpush1.msra.mxu0 0.0
        %1266 = vmatprep.subr.mxu0 0.0
        %1267 = vmatpush1.msra.mxu0 0.0
        %1268 = vmatprep.subr.mxu0 0.0
        %1269 = vmatpush1.msra.mxu0 0.0
        %1270 = vmatprep.subr.mxu0 0.0
        %1271 = vmatpush1.msra.mxu0 0.0
        %1272 = vmatprep.subr.mxu0 0.0
        %1273 = vmatpush1.msra.mxu0 0.0
        %1274 = vmatprep.subr.mxu0 0.0
        %1275 = vmatpush1.msra.mxu0 0.0
        %1276 = vmatprep.subr.mxu0 0.0
        %1277 = vmatpush1.msra.mxu0 0.0
        %1278 = vmatprep.subr.mxu0 0.0
        %1279 = vmatpush1.msra.mxu0 0.0
        %1280 = vmatprep.subr.mxu0 0.0
        %1281 = vmatpush1.msra.mxu0 0.0
        %1282 = vmatprep.subr.mxu0 0.0
        %1283 = vmatpush1.msra.mxu0 0.0
        %1284 = vmatprep.subr.mxu0 0.0
        %1285 = vmatpush1.msra.mxu0 %v1241
        %1286 = vmatprep.subr.mxu0 0.0
        %1287 = vmatpush1.msra.mxu0 %v1239
        %1288 = vmatprep.subr.mxu0 0.0
        %1289 = vmatpush2.msra.mxu0 0.0
        %1290 = vmatprep.subr.mxu0 0.0
        %1291 = vmatpush2.msra.mxu0 0.0
        %1292 = vmatprep.subr.mxu0 0.0
        %1293 = vmatpush2.msra.mxu0 0.0
        %1294 = vmatprep.subr.mxu0 0.0
        %1295 = vmatpush2.msra.mxu0 0.0
        %1296 = vmatprep.subr.mxu0 0.0
        %1297 = vmatpush2.msra.mxu0 0.0
        %1298 = vmatprep.subr.mxu0 0.0
        %1299 = vmatpush2.msra.mxu0 0.0
        %1300 = vmatprep.subr.mxu0 0.0
        %1301 = vmatpush2.msra.mxu0 0.0
        %1302 = vmatprep.subr.mxu0 0.0
        %1303 = vmatpush2.msra.mxu0 0.0
        %1304 = vmatprep.subr.mxu0 0.0
        %1305 = vmatpush2.msra.mxu0 0.0
        %1306 = vmatprep.subr.mxu0 0.0
        %1307 = vmatpush2.msra.mxu0 0.0
        %1308 = vmatprep.subr.mxu0 0.0
        %1309 = vmatpush2.msra.mxu0 0.0
        %1310 = vmatprep.subr.mxu0 0.0
        %1311 = vmatpush2.msra.mxu0 0.0
        %1312 = vmatprep.subr.mxu0 0.0
        %1313 = vmatpush2.msra.mxu0 0.0
        %1314 = vmatprep.subr.mxu0 0.0
        %1315 = vmatpush2.msra.mxu0 0.0
        %1316 = vmatprep.subr.mxu0 0.0
        %1317 = vmatpush2.msra.mxu0 0.0
        %1318 = vmatprep.subr.mxu0 0.0
        %1319 = vmatpush2.msra.mxu0 0.0
        %1320 = vmatprep.mubr.f32.mxu0 0.0
        %1321 = vmatmul.mubr.f32.gmra.mxu0 %v1245
        %v1322 = vpop.f32.mrf.mxu0
        %v1323 = vadd.f32 0.0, %v1322
        %v1324 = vpop.f32.mrf.mxu0
        %1325 = vmatprep.mubr.f32.mxu0 0.0
        %1326 = vmatmul.mubr.f32.gmra.mxu0 %v1248
        %v1327 = vpop.f32.mrf.mxu0
        %v1328 = vadd.f32 0.0, %v1327
        %v1329 = vpop.f32.mrf.mxu0
        %1330 = vmatprep.mubr.f32.mxu0 0.0
        %1331 = vmatmul.mubr.f32.gmra.mxu0 %v1251
        %v1332 = vpop.f32.mrf.mxu0
        %v1333 = vadd.f32 0.0, %v1332
        %v1334 = vpop.f32.mrf.mxu0
        %1335 = vmatprep.mubr.f32.mxu0 0.0
        %1336 = vmatmul.mubr.f32.gmra.mxu0 %v1254
        %v1337 = vpop.f32.mrf.mxu0
        %v1338 = vadd.f32 0.0, %v1337
        %v1339 = vpop.f32.mrf.mxu0
        %1340 = vdwg.mxu0
        %v1342 = vsel %vm939, %v1224, 0
        %v1345 = vsel %vm939, %v1225, 0
        %v1348 = vsel %vm939, %v1226, 0
        %v1351 = vsel %vm939, %v1227, 0
        %1353 = vmatprep.subr.mxu0 0.0
        %1354 = vmatpush1.msra.mxu0 0.0
        %1355 = vmatprep.subr.mxu0 0.0
        %1356 = vmatpush1.msra.mxu0 0.0
        %1357 = vmatprep.subr.mxu0 0.0
        %1358 = vmatpush1.msra.mxu0 0.0
        %1359 = vmatprep.subr.mxu0 0.0
        %1360 = vmatpush1.msra.mxu0 0.0
        %1361 = vmatprep.subr.mxu0 0.0
        %1362 = vmatpush1.msra.mxu0 0.0
        %1363 = vmatprep.subr.mxu0 0.0
        %1364 = vmatpush1.msra.mxu0 0.0
        %1365 = vmatprep.subr.mxu0 0.0
        %1366 = vmatpush1.msra.mxu0 0.0
        %1367 = vmatprep.subr.mxu0 0.0
        %1368 = vmatpush1.msra.mxu0 0.0
        %1369 = vmatprep.subr.mxu0 0.0
        %1370 = vmatpush1.msra.mxu0 0.0
        %1371 = vmatprep.subr.mxu0 0.0
        %1372 = vmatpush1.msra.mxu0 0.0
        %1373 = vmatprep.subr.mxu0 0.0
        %1374 = vmatpush1.msra.mxu0 0.0
        %1375 = vmatprep.subr.mxu0 0.0
        %1376 = vmatpush1.msra.mxu0 0.0
        %1377 = vmatprep.subr.mxu0 0.0
        %1378 = vmatpush1.msra.mxu0 0.0
        %1379 = vmatprep.subr.mxu0 0.0
        %1380 = vmatpush1.msra.mxu0 0.0
        %1381 = vmatprep.subr.mxu0 0.0
        %1382 = vmatpush1.msra.mxu0 %v1223
        %1383 = vmatprep.subr.mxu0 0.0
        %1384 = vmatpush1.msra.mxu0 %v1222
        %1385 = vmatprep.subr.mxu0 0.0
        %1386 = vmatpush2.msra.mxu0 0.0
        %1387 = vmatprep.subr.mxu0 0.0
        %1388 = vmatpush2.msra.mxu0 0.0
        %1389 = vmatprep.subr.mxu0 0.0
        %1390 = vmatpush2.msra.mxu0 0.0
        %1391 = vmatprep.subr.mxu0 0.0
        %1392 = vmatpush2.msra.mxu0 0.0
        %1393 = vmatprep.subr.mxu0 0.0
        %1394 = vmatpush2.msra.mxu0 0.0
        %1395 = vmatprep.subr.mxu0 0.0
        %1396 = vmatpush2.msra.mxu0 0.0
        %1397 = vmatprep.subr.mxu0 0.0
        %1398 = vmatpush2.msra.mxu0 0.0
        %1399 = vmatprep.subr.mxu0 0.0
        %1400 = vmatpush2.msra.mxu0 0.0
        %1401 = vmatprep.subr.mxu0 0.0
        %1402 = vmatpush2.msra.mxu0 0.0
        %1403 = vmatprep.subr.mxu0 0.0
        %1404 = vmatpush2.msra.mxu0 0.0
        %1405 = vmatprep.subr.mxu0 0.0
        %1406 = vmatpush2.msra.mxu0 0.0
        %1407 = vmatprep.subr.mxu0 0.0
        %1408 = vmatpush2.msra.mxu0 0.0
        %1409 = vmatprep.subr.mxu0 0.0
        %1410 = vmatpush2.msra.mxu0 0.0
        %1411 = vmatprep.subr.mxu0 0.0
        %1412 = vmatpush2.msra.mxu0 0.0
        %1413 = vmatprep.subr.mxu0 0.0
        %1414 = vmatpush2.msra.mxu0 0.0
        %1415 = vmatprep.subr.mxu0 0.0
        %1416 = vmatpush2.msra.mxu0 0.0
        %1417 = vmatprep.mubr.f32.mxu0 0.0
        %1418 = vmatmul.mubr.f32.gmra.mxu0 %v1342
        %v1419 = vpop.f32.mrf.mxu0
        %v1420 = vadd.f32 %v1323, %v1419
        %v1421 = vpop.f32.mrf.mxu0
        %1422 = vmatprep.mubr.f32.mxu0 0.0
        %1423 = vmatmul.mubr.f32.gmra.mxu0 %v1345
        %v1424 = vpop.f32.mrf.mxu0
        %v1425 = vadd.f32 %v1328, %v1424
        %v1426 = vpop.f32.mrf.mxu0
        %1427 = vmatprep.mubr.f32.mxu0 0.0
        %1428 = vmatmul.mubr.f32.gmra.mxu0 %v1348
        %v1429 = vpop.f32.mrf.mxu0
        %v1430 = vadd.f32 %v1333, %v1429
        %v1431 = vpop.f32.mrf.mxu0
        %1432 = vmatprep.mubr.f32.mxu0 0.0
        %1433 = vmatmul.mubr.f32.gmra.mxu0 %v1351
        %v1434 = vpop.f32.mrf.mxu0
        %v1435 = vadd.f32 %v1338, %v1434
        %v1436 = vpop.f32.mrf.mxu0
        %1437 = vdwg.mxu0
        %1439 = vset.pattern.permute.xlu0 0
        %1440 = vperm.xlu0 %1439, %v1232
        %v1441 = vpop.permute.xlu0 %1440
        %1444 = vset.pattern.permute.xlu0 0
        %1445 = vperm.xlu0 %1444, %v1233
        %v1446 = vpop.permute.xlu0 %1445
        %1449 = vset.pattern.permute.xlu0 0
        %1450 = vperm.xlu0 %1449, %v1234
        %v1451 = vpop.permute.xlu0 %1450
        %1454 = vset.pattern.permute.xlu0 0
        %1455 = vperm.xlu0 %1454, %v1235
        %v1456 = vpop.permute.xlu0 %1455
        %v1458 = vadd.f32 %v1420, %v1441
        %v1459 = vadd.f32 %v1425, %v1446
        %v1460 = vadd.f32 %v1430, %v1451
        %v1461 = vadd.f32 %v1435, %v1456
        %v1462 = vmax.f32 %v1458, 0.0
        %v1463 = vmax.f32 %v1459, 0.0
        %v1464 = vmax.f32 %v1460, 0.0
        %v1465 = vmax.f32 %v1461, 0.0
        %vm1466 = vcmp.ge.s32.totalorder %v921, 2
        %v1467 = vsel %vm1466, %v1462, 0.0
        %v1468 = vsel %vm1466, %v1463, 0.0
        %v1469 = vsel %vm1466, %v1464, 0.0
        %v1470 = vsel %vm1466, %v1465, 0.0
        %v1471 = vld [vmem:[%s12] sm:$0xff]
        %v1472 = vld [vmem:[%s12 + $0x8] sm:$0xff]
        %v1473 = vld [vmem:[%s12 + $0x10] sm:$0xff]
        %v1474 = vld [vmem:[%s12 + $0x18] sm:$0xff]
        %v1475 = vld [vmem:[%s13] sm:$0xff]
        %v1476 = vld [vmem:[%s13 + $0x8] sm:$0xff]
        %v1477 = vld [vmem:[%s13 + $0x10] sm:$0xff]
        %v1478 = vld [vmem:[%s13 + $0x18] sm:$0xff]
        %v1479 = vld [vmem:[%s14] sm:$0xff]
        %v1480 = vld [vmem:[%s14 + $0x8] sm:$0xff]
        %v1481 = vld [vmem:[%s14 + $0x10] sm:$0xff]
        %v1482 = vld [vmem:[%s14 + $0x18] sm:$0xff]
        %1487 = vrot.lane.b32.xlu0 %v1467, 126
        %v1488 = vpop.permute.xlu0 %1487
        %1489 = vrot.lane.b32.xlu0 %v1468, 126
        %v1490 = vpop.permute.xlu0 %1489
        %1491 = vrot.lane.b32.xlu0 %v1469, 126
        %v1492 = vpop.permute.xlu0 %1491
        %1493 = vrot.lane.b32.xlu0 %v1470, 126
        %v1494 = vpop.permute.xlu0 %1493
        %vm1499 = vcmask 261120
        %v1501 = vsel %vm1499, %v1475, 0
        %v1504 = vsel %vm1499, %v1476, 0
        %v1507 = vsel %vm1499, %v1477, 0
        %v1510 = vsel %vm1499, %v1478, 0
        %1512 = vmatprep.subr.mxu0 0.0
        %1513 = vmatpush1.msra.mxu0 0.0
        %1514 = vmatprep.subr.mxu0 0.0
        %1515 = vmatpush1.msra.mxu0 0.0
        %1516 = vmatprep.subr.mxu0 0.0
        %1517 = vmatpush1.msra.mxu0 0.0
        %1518 = vmatprep.subr.mxu0 0.0
        %1519 = vmatpush1.msra.mxu0 0.0
        %1520 = vmatprep.subr.mxu0 0.0
        %1521 = vmatpush1.msra.mxu0 0.0
        %1522 = vmatprep.subr.mxu0 0.0
        %1523 = vmatpush1.msra.mxu0 0.0
        %1524 = vmatprep.subr.mxu0 0.0
        %1525 = vmatpush1.msra.mxu0 0.0
        %1526 = vmatprep.subr.mxu0 0.0
        %1527 = vmatpush1.msra.mxu0 0.0
        %1528 = vmatprep.subr.mxu0 0.0
        %1529 = vmatpush1.msra.mxu0 0.0
        %1530 = vmatprep.subr.mxu0 0.0
        %1531 = vmatpush1.msra.mxu0 0.0
        %1532 = vmatprep.subr.mxu0 0.0
        %1533 = vmatpush1.msra.mxu0 0.0
        %1534 = vmatprep.subr.mxu0 0.0
        %1535 = vmatpush1.msra.mxu0 0.0
        %1536 = vmatprep.subr.mxu0 0.0
        %1537 = vmatpush1.msra.mxu0 %v1494
        %1538 = vmatprep.subr.mxu0 0.0
        %1539 = vmatpush1.msra.mxu0 %v1492
        %1540 = vmatprep.subr.mxu0 0.0
        %1541 = vmatpush1.msra.mxu0 %v1490
        %1542 = vmatprep.subr.mxu0 0.0
        %1543 = vmatpush1.msra.mxu0 %v1488
        %1544 = vmatprep.subr.mxu0 0.0
        %1545 = vmatpush2.msra.mxu0 0.0
        %1546 = vmatprep.subr.mxu0 0.0
        %1547 = vmatpush2.msra.mxu0 0.0
        %1548 = vmatprep.subr.mxu0 0.0
        %1549 = vmatpush2.msra.mxu0 0.0
        %1550 = vmatprep.subr.mxu0 0.0
        %1551 = vmatpush2.msra.mxu0 0.0
        %1552 = vmatprep.subr.mxu0 0.0
        %1553 = vmatpush2.msra.mxu0 0.0
        %1554 = vmatprep.subr.mxu0 0.0
        %1555 = vmatpush2.msra.mxu0 0.0
        %1556 = vmatprep.subr.mxu0 0.0
        %1557 = vmatpush2.msra.mxu0 0.0
        %1558 = vmatprep.subr.mxu0 0.0
        %1559 = vmatpush2.msra.mxu0 0.0
        %1560 = vmatprep.subr.mxu0 0.0
        %1561 = vmatpush2.msra.mxu0 0.0
        %1562 = vmatprep.subr.mxu0 0.0
        %1563 = vmatpush2.msra.mxu0 0.0
        %1564 = vmatprep.subr.mxu0 0.0
        %1565 = vmatpush2.msra.mxu0 0.0
        %1566 = vmatprep.subr.mxu0 0.0
        %1567 = vmatpush2.msra.mxu0 0.0
        %1568 = vmatprep.subr.mxu0 0.0
        %1569 = vmatpush2.msra.mxu0 0.0
        %1570 = vmatprep.subr.mxu0 0.0
        %1571 = vmatpush2.msra.mxu0 0.0
        %1572 = vmatprep.subr.mxu0 0.0
        %1573 = vmatpush2.msra.mxu0 0.0
        %1574 = vmatprep.subr.mxu0 0.0
        %1575 = vmatpush2.msra.mxu0 0.0
        %1576 = vmatprep.mubr.f32.mxu0 0.0
        %1577 = vmatmul.mubr.f32.gmra.mxu0 %v1501
        %v1578 = vpop.f32.mrf.mxu0
        %v1579 = vadd.f32 0.0, %v1578
        %v1580 = vpop.f32.mrf.mxu0
        %1581 = vmatprep.mubr.f32.mxu0 0.0
        %1582 = vmatmul.mubr.f32.gmra.mxu0 %v1504
        %v1583 = vpop.f32.mrf.mxu0
        %v1584 = vadd.f32 0.0, %v1583
        %v1585 = vpop.f32.mrf.mxu0
        %1586 = vmatprep.mubr.f32.mxu0 0.0
        %1587 = vmatmul.mubr.f32.gmra.mxu0 %v1507
        %v1588 = vpop.f32.mrf.mxu0
        %v1589 = vadd.f32 0.0, %v1588
        %v1590 = vpop.f32.mrf.mxu0
        %1591 = vmatprep.mubr.f32.mxu0 0.0
        %1592 = vmatmul.mubr.f32.gmra.mxu0 %v1510
        %v1593 = vpop.f32.mrf.mxu0
        %v1594 = vadd.f32 0.0, %v1593
        %v1595 = vpop.f32.mrf.mxu0
        %1596 = vdwg.mxu0
        %v1598 = vsel %vm1499, %v1471, 0
        %v1601 = vsel %vm1499, %v1472, 0
        %v1604 = vsel %vm1499, %v1473, 0
        %v1607 = vsel %vm1499, %v1474, 0
        %1609 = vmatprep.subr.mxu0 0.0
        %1610 = vmatpush1.msra.mxu0 0.0
        %1611 = vmatprep.subr.mxu0 0.0
        %1612 = vmatpush1.msra.mxu0 0.0
        %1613 = vmatprep.subr.mxu0 0.0
        %1614 = vmatpush1.msra.mxu0 0.0
        %1615 = vmatprep.subr.mxu0 0.0
        %1616 = vmatpush1.msra.mxu0 0.0
        %1617 = vmatprep.subr.mxu0 0.0
        %1618 = vmatpush1.msra.mxu0 0.0
        %1619 = vmatprep.subr.mxu0 0.0
        %1620 = vmatpush1.msra.mxu0 0.0
        %1621 = vmatprep.subr.mxu0 0.0
        %1622 = vmatpush1.msra.mxu0 0.0
        %1623 = vmatprep.subr.mxu0 0.0
        %1624 = vmatpush1.msra.mxu0 0.0
        %1625 = vmatprep.subr.mxu0 0.0
        %1626 = vmatpush1.msra.mxu0 0.0
        %1627 = vmatprep.subr.mxu0 0.0
        %1628 = vmatpush1.msra.mxu0 0.0
        %1629 = vmatprep.subr.mxu0 0.0
        %1630 = vmatpush1.msra.mxu0 0.0
        %1631 = vmatprep.subr.mxu0 0.0
        %1632 = vmatpush1.msra.mxu0 0.0
        %1633 = vmatprep.subr.mxu0 0.0
        %1634 = vmatpush1.msra.mxu0 %v1470
        %1635 = vmatprep.subr.mxu0 0.0
        %1636 = vmatpush1.msra.mxu0 %v1469
        %1637 = vmatprep.subr.mxu0 0.0
        %1638 = vmatpush1.msra.mxu0 %v1468
        %1639 = vmatprep.subr.mxu0 0.0
        %1640 = vmatpush1.msra.mxu0 %v1467
        %1641 = vmatprep.subr.mxu0 0.0
        %1642 = vmatpush2.msra.mxu0 0.0
        %1643 = vmatprep.subr.mxu0 0.0
        %1644 = vmatpush2.msra.mxu0 0.0
        %1645 = vmatprep.subr.mxu0 0.0
        %1646 = vmatpush2.msra.mxu0 0.0
        %1647 = vmatprep.subr.mxu0 0.0
        %1648 = vmatpush2.msra.mxu0 0.0
        %1649 = vmatprep.subr.mxu0 0.0
        %1650 = vmatpush2.msra.mxu0 0.0
        %1651 = vmatprep.subr.mxu0 0.0
        %1652 = vmatpush2.msra.mxu0 0.0
        %1653 = vmatprep.subr.mxu0 0.0
        %1654 = vmatpush2.msra.mxu0 0.0
        %1655 = vmatprep.subr.mxu0 0.0
        %1656 = vmatpush2.msra.mxu0 0.0
        %1657 = vmatprep.subr.mxu0 0.0
        %1658 = vmatpush2.msra.mxu0 0.0
        %1659 = vmatprep.subr.mxu0 0.0
        %1660 = vmatpush2.msra.mxu0 0.0
        %1661 = vmatprep.subr.mxu0 0.0
        %1662 = vmatpush2.msra.mxu0 0.0
        %1663 = vmatprep.subr.mxu0 0.0
        %1664 = vmatpush2.msra.mxu0 0.0
        %1665 = vmatprep.subr.mxu0 0.0
        %1666 = vmatpush2.msra.mxu0 0.0
        %1667 = vmatprep.subr.mxu0 0.0
        %1668 = vmatpush2.msra.mxu0 0.0
        %1669 = vmatprep.subr.mxu0 0.0
        %1670 = vmatpush2.msra.mxu0 0.0
        %1671 = vmatprep.subr.mxu0 0.0
        %1672 = vmatpush2.msra.mxu0 0.0
        %1673 = vmatprep.mubr.f32.mxu0 0.0
        %1674 = vmatmul.mubr.f32.gmra.mxu0 %v1598
        %v1675 = vpop.f32.mrf.mxu0
        %v1676 = vadd.f32 %v1579, %v1675
        %v1677 = vpop.f32.mrf.mxu0
        %1678 = vmatprep.mubr.f32.mxu0 0.0
        %1679 = vmatmul.mubr.f32.gmra.mxu0 %v1601
        %v1680 = vpop.f32.mrf.mxu0
        %v1681 = vadd.f32 %v1584, %v1680
        %v1682 = vpop.f32.mrf.mxu0
        %1683 = vmatprep.mubr.f32.mxu0 0.0
        %1684 = vmatmul.mubr.f32.gmra.mxu0 %v1604
        %v1685 = vpop.f32.mrf.mxu0
        %v1686 = vadd.f32 %v1589, %v1685
        %v1687 = vpop.f32.mrf.mxu0
        %1688 = vmatprep.mubr.f32.mxu0 0.0
        %1689 = vmatmul.mubr.f32.gmra.mxu0 %v1607
        %v1690 = vpop.f32.mrf.mxu0
        %v1691 = vadd.f32 %v1594, %v1690
        %v1692 = vpop.f32.mrf.mxu0
        %1693 = vdwg.mxu0
        %1695 = vset.pattern.permute.xlu0 0
        %1696 = vperm.xlu0 %1695, %v1479
        %v1697 = vpop.permute.xlu0 %1696
        %1700 = vset.pattern.permute.xlu0 0
        %1701 = vperm.xlu0 %1700, %v1480
        %v1702 = vpop.permute.xlu0 %1701
        %1705 = vset.pattern.permute.xlu0 0
        %1706 = vperm.xlu0 %1705, %v1481
        %v1707 = vpop.permute.xlu0 %1706
        %1710 = vset.pattern.permute.xlu0 0
        %1711 = vperm.xlu0 %1710, %v1482
        %v1712 = vpop.permute.xlu0 %1711
        %v1714 = vadd.f32 %v1676, %v1697
        %v1715 = vadd.f32 %v1681, %v1702
        %v1716 = vadd.f32 %v1686, %v1707
        %v1717 = vadd.f32 %v1691, %v1712
        %v1718 = vmax.f32 %v1714, 0.0
        %v1719 = vmax.f32 %v1715, 0.0
        %v1720 = vmax.f32 %v1716, 0.0
        %v1721 = vmax.f32 %v1717, 0.0
        %v1722 = vld [vmem:[%s15] sm:$0xff]
        %v1723 = vld [vmem:[%s15 + $0x8] sm:$0xff]
        %v1724 = vld [vmem:[%s15 + $0x10] sm:$0xff]
        %v1725 = vld [vmem:[%s15 + $0x18] sm:$0xff]
        %v1726 = vld [vmem:[%s16] sm:$0xff]
        %v1727 = vld [vmem:[%s16 + $0x8] sm:$0xff]
        %v1728 = vld [vmem:[%s16 + $0x10] sm:$0xff]
        %v1729 = vld [vmem:[%s16 + $0x18] sm:$0xff]
        %1731 = vset.pattern.permute.xlu0 0
        %1732 = vperm.xlu0 %1731, %v1726
        %v1733 = vpop.permute.xlu0 %1732
        %1736 = vset.pattern.permute.xlu0 0
        %1737 = vperm.xlu0 %1736, %v1727
        %v1738 = vpop.permute.xlu0 %1737
        %1741 = vset.pattern.permute.xlu0 0
        %1742 = vperm.xlu0 %1741, %v1728
        %v1743 = vpop.permute.xlu0 %1742
        %1746 = vset.pattern.permute.xlu0 0
        %1747 = vperm.xlu0 %1746, %v1729
        %v1748 = vpop.permute.xlu0 %1747
        %1750 = vrot.lane.b32.xlu0 %v1222, 124
        %v1751 = vpop.permute.xlu0 %1750
        %1752 = vrot.lane.b32.xlu0 %v1223, 124
        %v1753 = vpop.permute.xlu0 %1752
        %v1757 = vsel %vm939, %v1722, 0
        %v1760 = vsel %vm939, %v1723, 0
        %v1763 = vsel %vm939, %v1724, 0
        %v1766 = vsel %vm939, %v1725, 0
        %1768 = vmatprep.subr.mxu0 0.0
        %1769 = vmatpush1.msra.mxu0 0.0
        %1770 = vmatprep.subr.mxu0 0.0
        %1771 = vmatpush1.msra.mxu0 0.0
        %1772 = vmatprep.subr.mxu0 0.0
        %1773 = vmatpush1.msra.mxu0 0.0
        %1774 = vmatprep.subr.mxu0 0.0
        %1775 = vmatpush1.msra.mxu0 0.0
        %1776 = vmatprep.subr.mxu0 0.0
        %1777 = vmatpush1.msra.mxu0 0.0
        %1778 = vmatprep.subr.mxu0 0.0
        %1779 = vmatpush1.msra.mxu0 0.0
        %1780 = vmatprep.subr.mxu0 0.0
        %1781 = vmatpush1.msra.mxu0 0.0
        %1782 = vmatprep.subr.mxu0 0.0
        %1783 = vmatpush1.msra.mxu0 0.0
        %1784 = vmatprep.subr.mxu0 0.0
        %1785 = vmatpush1.msra.mxu0 0.0
        %1786 = vmatprep.subr.mxu0 0.0
        %1787 = vmatpush1.msra.mxu0 0.0
        %1788 = vmatprep.subr.mxu0 0.0
        %1789 = vmatpush1.msra.mxu0 0.0
        %1790 = vmatprep.subr.mxu0 0.0
        %1791 = vmatpush1.msra.mxu0 0.0
        %1792 = vmatprep.subr.mxu0 0.0
        %1793 = vmatpush1.msra.mxu0 0.0
        %1794 = vmatprep.subr.mxu0 0.0
        %1795 = vmatpush1.msra.mxu0 0.0
        %1796 = vmatprep.subr.mxu0 0.0
        %1797 = vmatpush1.msra.mxu0 %v1753
        %1798 = vmatprep.subr.mxu0 0.0
        %1799 = vmatpush1.msra.mxu0 %v1751
        %1800 = vmatprep.subr.mxu0 0.0
        %1801 = vmatpush2.msra.mxu0 0.0
        %1802 = vmatprep.subr.mxu0 0.0
        %1803 = vmatpush2.msra.mxu0 0.0
        %1804 = vmatprep.subr.mxu0 0.0
        %1805 = vmatpush2.msra.mxu0 0.0
        %1806 = vmatprep.subr.mxu0 0.0
        %1807 = vmatpush2.msra.mxu0 0.0
        %1808 = vmatprep.subr.mxu0 0.0
        %1809 = vmatpush2.msra.mxu0 0.0
        %1810 = vmatprep.subr.mxu0 0.0
        %1811 = vmatpush2.msra.mxu0 0.0
        %1812 = vmatprep.subr.mxu0 0.0
        %1813 = vmatpush2.msra.mxu0 0.0
        %1814 = vmatprep.subr.mxu0 0.0
        %1815 = vmatpush2.msra.mxu0 0.0
        %1816 = vmatprep.subr.mxu0 0.0
        %1817 = vmatpush2.msra.mxu0 0.0
        %1818 = vmatprep.subr.mxu0 0.0
        %1819 = vmatpush2.msra.mxu0 0.0
        %1820 = vmatprep.subr.mxu0 0.0
        %1821 = vmatpush2.msra.mxu0 0.0
        %1822 = vmatprep.subr.mxu0 0.0
        %1823 = vmatpush2.msra.mxu0 0.0
        %1824 = vmatprep.subr.mxu0 0.0
        %1825 = vmatpush2.msra.mxu0 0.0
        %1826 = vmatprep.subr.mxu0 0.0
        %1827 = vmatpush2.msra.mxu0 0.0
        %1828 = vmatprep.subr.mxu0 0.0
        %1829 = vmatpush2.msra.mxu0 0.0
        %1830 = vmatprep.subr.mxu0 0.0
        %1831 = vmatpush2.msra.mxu0 0.0
        %1832 = vmatprep.mubr.f32.mxu0 0.0
        %1833 = vmatmul.mubr.f32.gmra.mxu0 %v1757
        %v1834 = vpop.f32.mrf.mxu0
        %v1835 = vadd.f32 %v1733, %v1834
        %v1836 = vpop.f32.mrf.mxu0
        %1837 = vmatprep.mubr.f32.mxu0 0.0
        %1838 = vmatmul.mubr.f32.gmra.mxu0 %v1760
        %v1839 = vpop.f32.mrf.mxu0
        %v1840 = vadd.f32 %v1738, %v1839
        %v1841 = vpop.f32.mrf.mxu0
        %1842 = vmatprep.mubr.f32.mxu0 0.0
        %1843 = vmatmul.mubr.f32.gmra.mxu0 %v1763
        %v1844 = vpop.f32.mrf.mxu0
        %v1845 = vadd.f32 %v1743, %v1844
        %v1846 = vpop.f32.mrf.mxu0
        %1847 = vmatprep.mubr.f32.mxu0 0.0
        %1848 = vmatmul.mubr.f32.gmra.mxu0 %v1766
        %v1849 = vpop.f32.mrf.mxu0
        %v1850 = vadd.f32 %v1748, %v1849
        %v1851 = vpop.f32.mrf.mxu0
        %1852 = vdwg.mxu0
        %v1853 = vadd.f32 %v1718, %v1835
        %v1854 = vadd.f32 %v1719, %v1840
        %v1855 = vadd.f32 %v1720, %v1845
        %v1856 = vadd.f32 %v1721, %v1850
        %v1857 = vmax.f32 %v1853, 0.0
        %v1858 = vmax.f32 %v1854, 0.0
        %v1859 = vmax.f32 %v1855, 0.0
        %v1860 = vmax.f32 %v1856, 0.0
        %v1861 = vld [vmem:[%s17] sm:$0xff]
        %v1862 = vld [vmem:[%s17 + $0x8] sm:$0xff]
        %v1863 = vld [vmem:[%s17 + $0x10] sm:$0xff]
        %v1864 = vld [vmem:[%s17 + $0x18] sm:$0xff]
        %v1865 = vld [vmem:[#allocation2] sm:$0x1]
        %v1866 = vld [vmem:[%s19] sm:$0x1f]
        %v1867 = vld [vmem:[%s20] sm:$0x1f]
        %1869 = vset.pattern.permute.xlu0 0
        %1870 = vperm.xlu0 %1869, %v1861
        %v1871 = vpop.permute.xlu0 %1870
        %1874 = vset.pattern.permute.xlu0 0
        %1875 = vperm.xlu0 %1874, %v1862
        %v1876 = vpop.permute.xlu0 %1875
        %1879 = vset.pattern.permute.xlu0 0
        %1880 = vperm.xlu0 %1879, %v1863
        %v1881 = vpop.permute.xlu0 %1880
        %1884 = vset.pattern.permute.xlu0 0
        %1885 = vperm.xlu0 %1884, %v1864
        %v1886 = vpop.permute.xlu0 %1885
        %v1888 = vmul.f32 %v1857, %v1871
        %v1889 = vmul.f32 %v1858, %v1876
        %v1890 = vmul.f32 %v1859, %v1881
        %v1891 = vmul.f32 %v1860, %v1886
        %v1892 = vsel %vm939, %v1888, 0.0
        %v1893 = vsel %vm939, %v1889, 0.0
        %v1894 = vadd.f32 %v1892, %v1893
        %v1895 = vsel %vm939, %v1890, 0.0
        %v1896 = vadd.f32 %v1894, %v1895
        %v1897 = vsel %vm939, %v1891, 0.0
        %v1898 = vadd.f32 %v1896, %v1897
        %v1899 = vrot.slane %v1898, 4
        %v1900 = vadd.f32 %v1898, %v1899
        %v1901 = vrot.slane %v1900, 2
        %v1902 = vadd.f32 %v1900, %v1901
        %v1903 = vrot.slane %v1902, 1
        %v1904 = vadd.f32 %v1902, %v1903
        %1906 = vset.pattern.permute.xlu0 0
        %1907 = vperm.xlu0 %1906, %v1865
        %v1908 = vpop.permute.xlu0 %1907
        %v1910 = vlaneseq
        %v1911 = vshrl.u32 %v1910, 7
        %v1912 = vsub.s32 0, %v1911
        %v1913 = vrot.slane %v1908, %v1912
        %v1914 = vadd.f32 %v1904, %v1913
        %v1915 = vxor.u32 %v1914, 2147483648
        %v1916 = vmul.f32 %v1915, 1.442695
        %v1917 = vpow.pop %v1916
        %v1918 = vadd.f32 %v1917, 1.0
        %v1919 = vrcp.pop %v1918
        %v1920 = vmul.f32 1.0, %v1919
        %v1921 = vmul.f32 %v1857, %v1920
        %v1922 = vmul.f32 %v1858, %v1920
        %v1923 = vmul.f32 %v1859, %v1920
        %v1924 = vmul.f32 %v1860, %v1920
        %1926 = vset.pattern.permute.xlu0 0
        %1927 = vperm.xlu0 %1926, %v1867
        %v1928 = vpop.permute.xlu0 %1927
        %v1931 = vsel %vm1499, %v1866, 0
        %1933 = vmatprep.subr.mxu0 0.0
        %1934 = vmatpush1.msra.mxu0 0.0
        %1935 = vmatprep.subr.mxu0 0.0
        %1936 = vmatpush1.msra.mxu0 0.0
        %1937 = vmatprep.subr.mxu0 0.0
        %1938 = vmatpush1.msra.mxu0 0.0
        %1939 = vmatprep.subr.mxu0 0.0
        %1940 = vmatpush1.msra.mxu0 0.0
        %1941 = vmatprep.subr.mxu0 0.0
        %1942 = vmatpush1.msra.mxu0 0.0
        %1943 = vmatprep.subr.mxu0 0.0
        %1944 = vmatpush1.msra.mxu0 0.0
        %1945 = vmatprep.subr.mxu0 0.0
        %1946 = vmatpush1.msra.mxu0 0.0
        %1947 = vmatprep.subr.mxu0 0.0
        %1948 = vmatpush1.msra.mxu0 0.0
        %1949 = vmatprep.subr.mxu0 0.0
        %1950 = vmatpush1.msra.mxu0 0.0
        %1951 = vmatprep.subr.mxu0 0.0
        %1952 = vmatpush1.msra.mxu0 0.0
        %1953 = vmatprep.subr.mxu0 0.0
        %1954 = vmatpush1.msra.mxu0 0.0
        %1955 = vmatprep.subr.mxu0 0.0
        %1956 = vmatpush1.msra.mxu0 0.0
        %1957 = vmatprep.subr.mxu0 0.0
        %1958 = vmatpush1.msra.mxu0 %v1924
        %1959 = vmatprep.subr.mxu0 0.0
        %1960 = vmatpush1.msra.mxu0 %v1923
        %1961 = vmatprep.subr.mxu0 0.0
        %1962 = vmatpush1.msra.mxu0 %v1922
        %1963 = vmatprep.subr.mxu0 0.0
        %1964 = vmatpush1.msra.mxu0 %v1921
        %1965 = vmatprep.subr.mxu0 0.0
        %1966 = vmatpush2.msra.mxu0 0.0
        %1967 = vmatprep.subr.mxu0 0.0
        %1968 = vmatpush2.msra.mxu0 0.0
        %1969 = vmatprep.subr.mxu0 0.0
        %1970 = vmatpush2.msra.mxu0 0.0
        %1971 = vmatprep.subr.mxu0 0.0
        %1972 = vmatpush2.msra.mxu0 0.0
        %1973 = vmatprep.subr.mxu0 0.0
        %1974 = vmatpush2.msra.mxu0 0.0
        %1975 = vmatprep.subr.mxu0 0.0
        %1976 = vmatpush2.msra.mxu0 0.0
        %1977 = vmatprep.subr.mxu0 0.0
        %1978 = vmatpush2.msra.mxu0 0.0
        %1979 = vmatprep.subr.mxu0 0.0
        %1980 = vmatpush2.msra.mxu0 0.0
        %1981 = vmatprep.subr.mxu0 0.0
        %1982 = vmatpush2.msra.mxu0 0.0
        %1983 = vmatprep.subr.mxu0 0.0
        %1984 = vmatpush2.msra.mxu0 0.0
        %1985 = vmatprep.subr.mxu0 0.0
        %1986 = vmatpush2.msra.mxu0 0.0
        %1987 = vmatprep.subr.mxu0 0.0
        %1988 = vmatpush2.msra.mxu0 0.0
        %1989 = vmatprep.subr.mxu0 0.0
        %1990 = vmatpush2.msra.mxu0 0.0
        %1991 = vmatprep.subr.mxu0 0.0
        %1992 = vmatpush2.msra.mxu0 0.0
        %1993 = vmatprep.subr.mxu0 0.0
        %1994 = vmatpush2.msra.mxu0 0.0
        %1995 = vmatprep.subr.mxu0 0.0
        %1996 = vmatpush2.msra.mxu0 0.0
        %1997 = vmatprep.mubr.f32.mxu0 0.0
        %1998 = vmatmul.mubr.f32.gmra.mxu0 %v1931
        %v1999 = vpop.f32.mrf.mxu0
        %v2000 = vadd.f32 %v1928, %v1999
        %v2001 = vpop.f32.mrf.mxu0
        %2002 = vdwg.mxu0
        %vm2003 = vcmask 126976
        %2004 = vst.msk [vmem:[%s723] sm:$0x1f] %vm2003, %v2000
        %v2005 = vsel %vm2003, %v2000, -inf
        %v2006 = vrot.slane %v2005, 4
        %v2007 = vmax.f32 %v2005, %v2006
        %v2008 = vrot.slane %v2007, 2
        %v2009 = vmax.f32 %v2007, %v2008
        %v2010 = vrot.slane %v2009, 1
        %v2011 = vmax.f32 %v2009, %v2010
        %v2012 = vsub.f32 %v2000, %v2011
        %v2013 = vmul.f32 %v2012, 1.442695
        %v2014 = vpow.pop %v2013
        %v2015 = vsel %vm2003, %v2014, 0.0
        %v2016 = vrot.slane %v2015, 4
        %v2017 = vadd.f32 %v2015, %v2016
        %v2018 = vrot.slane %v2017, 2
        %v2019 = vadd.f32 %v2017, %v2018
        %v2020 = vrot.slane %v2019, 1
        %v2021 = vadd.f32 %v2019, %v2020
        %v2022 = vrcp.pop %v2021
        %v2023 = vmul.f32 %v2014, %v2022
        %2024 = vst.msk [vmem:[%s727] sm:$0x1f] %vm2003, %v2023
        %v2025 = vlaneseq
        %v2026 = vshrl.u32 %v2025, 7
        %v2027 = vcvt.s32.f32 %v2026
        %v2028 = vsel %vm2003, %v2023, -inf
        %v2029 = vrot.slane %v2028, 4
        %v2030 = vmax.f32 %v2028, %v2029
        %v2031 = vrot.slane %v2030, 2
        %v2032 = vmax.f32 %v2030, %v2031
        %v2033 = vrot.slane %v2032, 1
        %v2034 = vmax.f32 %v2032, %v2033
        %vm2035 = vcmp.eq.f32.partialorder %v2023, %v2034
        %v2036 = vsel %vm2035, %v2027, 5.0
        %v2037 = vsel %vm2003, %v2036, inf
        %v2038 = vrot.slane %v2037, 4
        %v2039 = vmin.f32 %v2037, %v2038
        %v2040 = vrot.slane %v2039, 2
        %v2041 = vmin.f32 %v2039, %v2040
        %v2042 = vrot.slane %v2041, 1
        %v2043 = vmin.f32 %v2041, %v2042
        %v2044 = vcvt.f32.s32.to.zero.pseudo %v2043
        %vm2045 = vcmask 122880
        %2046 = vst.msk [vmem:[%s715] sm:$0x1] %vm2045, %v2044
        %p2047 = scmp.lt.s32.totalorder %s40, 1
        %s2048 = scalar_select %p2047, %s40, 1
        %s2049 = smul.addr %s2048, 8
        %s2050 = scalar_lea.vmem %s21, %s2049
        %p2051 = scmp.lt.s32.totalorder %s40, 1
        %s2052 = scalar_select %p2051, %s40, 1
        %s2053 = smul.addr %s2052, 8
        %s2054 = scalar_lea.vmem %s22, %s2053
        %s2055 = sand.u32 %s546, 1
        %s2056 = scalar_lea.sflag [#allocation4], %s2055
        %s2057 = sand.u32 %s546, 1
        %s2058 = scalar_lea.vmem [#allocation3], %s2057
        // Predicated region
        $region105: #{tpu_custom_call.1} parent=103 // pred_check
          %p2059 = pneg %p504
        $region106: #{tpu_custom_call.1} parent=103 // pred_check_branch
          %2061 = sbr.rel (%p2059) target = $region108
        $region107: #{tpu_custom_call.1} parent=103 // pred_region
          _
        $region108: #{tpu_custom_call.1} parent=103 // pred_fallthru
          _
        // Predicated region
        $region109: #{tpu_custom_call.1} parent=103 // pred_check
          %p2062 = pneg %p530
        $region110: #{tpu_custom_call.1} parent=103 // pred_check_branch
          %2064 = sbr.rel (%p2062) target = $region112
        $region111: #{tpu_custom_call.1} parent=103 // pred_region
          _
        $region112: #{tpu_custom_call.1} parent=103 // pred_fallthru
          _
        // Predicated region
        $region113: #{tpu_custom_call.1} parent=103 // pred_check
          %p2065 = pneg %p556
        $region114: #{tpu_custom_call.1} parent=103 // pred_check_branch
          %2067 = sbr.rel (%p2065) target = $region116
        $region115: #{tpu_custom_call.1} parent=103 // pred_region
          %s2069 = ssub.s32 16, 16
          %2070 = vsyncadd %s2056, %s2069
          %s2071 = smul.addr %s40, 16
          %s2072 = scalar_lea.hbm %s23, %s2071
          %s2074 = sshll.u32 %s2058, 4
          %s2075 = int_to_ptr.vmem [resolvable:$true] %s2074
          %2077 = dma.vmem_to_hbm [thread:$0]  %s2075, 16, %s2072, %s2056
        $region116: #{tpu_custom_call.1} parent=103 // pred_fallthru
          _
      $region104: #{tpu_custom_call.1} parent=5 // pred_fallthru
        _
      %p2078 = scmp.le.s32.totalorder 2, %s35
      // Predicated region
      $region117: #{tpu_custom_call.1} parent=5 // pred_check
        %p2079 = pneg %p2078
      $region118: #{tpu_custom_call.1} parent=5 // pred_check_branch
        %2081 = sbr.rel (%p2079) target = $region120
      $region119: #{tpu_custom_call.1} parent=5 // pred_region
        %s2082 = ssub.s32 %s35, 2
        // Predicated region
        $region121: #{tpu_custom_call.1} parent=119 // pred_check
          %p2083 = pneg %p510
        $region122: #{tpu_custom_call.1} parent=119 // pred_check_branch
          %2085 = sbr.rel (%p2083) target = $region124
        $region123: #{tpu_custom_call.1} parent=119 // pred_region
          %p2086 = scmp.lt.s32.totalorder %s41, 1
          %s2087 = scalar_select %p2086, %s41, 1
          %s2088 = smul.addr %s2087, 8
          %s2089 = scalar_lea.vmem %s21, %s2088
        $region124: #{tpu_custom_call.1} parent=119 // pred_fallthru
          _
        // Predicated region
        $region125: #{tpu_custom_call.1} parent=119 // pred_check
          %p2090 = pneg %p536
        $region126: #{tpu_custom_call.1} parent=119 // pred_check_branch
          %2092 = sbr.rel (%p2090) target = $region128
        $region127: #{tpu_custom_call.1} parent=119 // pred_region
          %p2093 = scmp.lt.s32.totalorder %s41, 1
          %s2094 = scalar_select %p2093, %s41, 1
          %s2095 = smul.addr %s2094, 8
          %s2096 = scalar_lea.vmem %s22, %s2095
        $region128: #{tpu_custom_call.1} parent=119 // pred_fallthru
          _
        // Predicated region
        $region129: #{tpu_custom_call.1} parent=119 // pred_check
          %p2097 = pneg %p562
        $region130: #{tpu_custom_call.1} parent=119 // pred_check_branch
          %2099 = sbr.rel (%p2097) target = $region132
        $region131: #{tpu_custom_call.1} parent=119 // pred_region
          %s2100 = sand.u32 %s547, 1
          %s2101 = scalar_lea.sflag [#allocation4], %s2100
          %s2102 = sand.u32 %s547, 1
          %s2103 = scalar_lea.vmem [#allocation3], %s2102
          %2104 = dma.done %s2101, 16
        $region132: #{tpu_custom_call.1} parent=119 // pred_fallthru
          _
      $region120: #{tpu_custom_call.1} parent=5 // pred_fallthru
        _
    $region6: #{tpu_custom_call.1} parent=1 // loop_footer
      %s39 = sadd.s32 1, %s35
    $region7: #{tpu_custom_call.1} parent=1 // loop_footer_branch
      %34 = sbr.rel target = $region3
    $region8: #{tpu_custom_call.1} parent=1 // loop_exit
      _
    %2105 = vsyncpa [#allocation4], 1
    %s2106 = scalar_lea.sflag [#allocation4], 1
    %2107 = vsyncpa %s2106, 1

</llo_original>
